<compile_context>
chip_gen: v7x
topology: tpu7x:2x2x1
jax: 0.10.0
libtpu: 0.0.40
codegen_flags: <defaults>
</compile_context>

<pallas_src>
import functools

import jax
import jax.numpy as jnp
from jax import lax
from jax.experimental import pallas as pl
from jax.experimental.pallas import tpu as pltpu


def _linear_attention_kernel(x_ref, g1_ref, wqkv_ref, wout_ref, bout_ref,
                             g2_ref, o_ref, *, heads, dim_head, n_valid):
    # x_ref: (1, C, HWp)   g1_ref/g2_ref/bout_ref: (C, 1)
    # wqkv_ref: (3*HD, C)  wout_ref: (C, HD)       o_ref: (1, C, HWp)
    C = x_ref.shape[1]
    HWp = x_ref.shape[2]
    HD = heads * dim_head

    x = x_ref[0].astype(jnp.float32)                       # (C, HWp)

    # ---- RMSNorm #1 (channel-wise).  g1 already holds g * sqrt(C). ----
    ss = jnp.sum(x * x, axis=0, keepdims=True)             # (1, HWp)
    inv = lax.rsqrt(jnp.maximum(ss, 1e-24))                 # == 1/max(||x||, 1e-12)
    xn = x * inv * g1_ref[...].astype(jnp.float32)          # (C, HWp)

    # ---- to_qkv 1x1 conv: (3HD, C) @ (C, HWp) ----
    qkv = jnp.dot(wqkv_ref[...].astype(jnp.float32), xn,
                  preferred_element_type=jnp.float32)       # (3HD, HWp)
    q = qkv[0:HD].reshape(heads, dim_head, HWp)
    k = qkv[HD:2 * HD].reshape(heads, dim_head, HWp)
    v = qkv[2 * HD:3 * HD].reshape(heads, dim_head, HWp)

    # ---- softmax(q) over the dim_head axis ----
    q = q - jnp.max(q, axis=1, keepdims=True)
    q = jnp.exp(q)
    q = q / jnp.sum(q, axis=1, keepdims=True)

    # ---- softmax(k) over the spatial axis (mask out lane padding) ----
    if n_valid != HWp:
        mask = lax.broadcasted_iota(jnp.int32, (1, 1, HWp), 2) < n_valid
        k = jnp.where(mask, k, -jnp.inf)
    k = k - jnp.max(k, axis=2, keepdims=True)
    k = jnp.exp(k)
    k = k / jnp.sum(k, axis=2, keepdims=True)

    # ---- context = einsum('h d n, h e n -> h d e', k, v) ----
    context = lax.dot_general(k, v, (((2,), (2,)), ((0,), (0,))),
                              preferred_element_type=jnp.float32)
    # ---- out = einsum('h d e, h d n -> h e n', context, q) ----
    out = lax.dot_general(context, q, (((1,), (1,)), ((0,), (0,))),
                          preferred_element_type=jnp.float32)
    out = out.reshape(HD, HWp)

    # ---- to_out 1x1 conv (+bias); q-scale already folded into wout ----
    y = jnp.dot(wout_ref[...].astype(jnp.float32), out,
                preferred_element_type=jnp.float32)          # (C, HWp)
    y = y + bout_ref[...].astype(jnp.float32)

    # ---- RMSNorm #2 (g2 already holds g * sqrt(C)) ----
    ss2 = jnp.sum(y * y, axis=0, keepdims=True)
    inv2 = lax.rsqrt(jnp.maximum(ss2, 1e-24))
    y = y * inv2 * g2_ref[...].astype(jnp.float32)

    o_ref[0] = y.astype(o_ref.dtype)


def linear_attention(x, g1, w_qkv, w_out, b_out, g2, *, heads=4, dim_head=32):
    """x: (N, C, H, W); g1/g2: (1, C, 1, 1); w_qkv: (3*heads*dim_head, C);
    w_out: (C, heads*dim_head); b_out: (C,). Returns (N, C, H, W)."""
    N, C, H, W = x.shape
    HD = heads * dim_head
    assert w_qkv.shape == (3 * HD, C) and w_out.shape == (C, HD)

    HW = H * W
    HWp = ((HW + 127) // 128) * 128          # lane-align spatial axis
    scale = dim_head ** -0.5

    xr = x.reshape(N, C, HW)
    if HWp != HW:
        xr = jnp.pad(xr, ((0, 0), (0, 0), (0, HWp - HW)))

    # Fold constants once on the host side.
    g1s = (g1.reshape(C, 1) * (C ** 0.5)).astype(jnp.float32)
    g2s = (g2.reshape(C, 1) * (C ** 0.5)).astype(jnp.float32)
    wout_s = (w_out * scale).astype(jnp.float32)   # q-scale folded into to_out weight
    bout_r = b_out.reshape(C, 1).astype(jnp.float32)

    kernel = functools.partial(_linear_attention_kernel,
                               heads=heads, dim_head=dim_head, n_valid=HW)

    out = pl.pallas_call(
        kernel,
        out_shape=jax.ShapeDtypeStruct((N, C, HWp), x.dtype),
        grid=(N,),
        in_specs=[
            pl.BlockSpec((1, C, HWp), lambda b: (b, 0, 0)),   # x (per-image slab)
            pl.BlockSpec((C, 1), lambda b: (0, 0)),           # g1 * sqrt(C)
            pl.BlockSpec((3 * HD, C), lambda b: (0, 0)),      # w_qkv
            pl.BlockSpec((C, HD), lambda b: (0, 0)),          # w_out * scale
            pl.BlockSpec((C, 1), lambda b: (0, 0)),           # b_out
            pl.BlockSpec((C, 1), lambda b: (0, 0)),           # g2 * sqrt(C)
        ],
        out_specs=pl.BlockSpec((1, C, HWp), lambda b: (b, 0, 0)),
        compiler_params=pltpu.CompilerParams(
            dimension_semantics=("parallel",)),
    )(xr, g1s, w_qkv, wout_s, bout_r, g2s)

    if HWp != HW:
        out = out[:, :, :HW]
    return out.reshape(N, C, H, W)


def linear_attention_ref(x, g1, w_qkv, w_out, b_out, g2, *, heads, dim_head):
    # Pure-JAX reference matching the PyTorch module.
    N, C, H, W = x.shape
    HD = heads * dim_head
    scale = dim_head ** -0.5
    hi = jax.lax.Precision.HIGHEST

    def rmsnorm(t, g):
        n = jnp.sqrt(jnp.sum(t * t, axis=1, keepdims=True))
        n = jnp.maximum(n, 1e-12)
        return t / n * g * (C ** 0.5)

    xn = rmsnorm(x.astype(jnp.float32), g1.astype(jnp.float32))
    qkv = jnp.einsum('oc,nchw->nohw', w_qkv, xn, precision=hi)
    q, k, v = jnp.split(qkv, 3, axis=1)
    q, k, v = (t.reshape(N, heads, dim_head, H * W) for t in (q, k, v))
    q = jax.nn.softmax(q, axis=-2)
    k = jax.nn.softmax(k, axis=-1)
    q = q * scale
    context = jnp.einsum('bhdn,bhen->bhde', k, v, precision=hi)
    out = jnp.einsum('bhde,bhdn->bhen', context, q, precision=hi)
    out = out.reshape(N, HD, H, W)
    y = jnp.einsum('oc,nchw->nohw', w_out, out, precision=hi)
    y = y + b_out.reshape(1, C, 1, 1)
    return rmsnorm(y, g2.astype(jnp.float32)).astype(x.dtype)


if __name__ == "__main__":
    key = jax.random.PRNGKey(0)
    k1, k2, k3, k4 = jax.random.split(key, 4)

    N, C, H, W = 2, 32, 16, 16
    heads, dim_head = 4, 32
    HD = heads * dim_head

    x = jax.random.normal(k1, (N, C, H, W), dtype=jnp.float32)
    g1 = jnp.ones((1, C, 1, 1), dtype=jnp.float32)            # RMSNorm init
    g2 = jnp.ones((1, C, 1, 1), dtype=jnp.float32)
    w_qkv = jax.random.normal(k2, (3 * HD, C), jnp.float32) * (C ** -0.5)
    w_out = jax.random.normal(k3, (C, HD), jnp.float32) * (HD ** -0.5)
    b_out = jax.random.normal(k4, (C,), jnp.float32) * 0.1

    out = linear_attention(x, g1, w_qkv, w_out, b_out, g2,
                           heads=heads, dim_head=dim_head)
    out = jax.block_until_ready(out)

    expected = linear_attention_ref(x, g1, w_qkv, w_out, b_out, g2,
                                    heads=heads, dim_head=dim_head)
    assert out.shape == (N, C, H, W)
    assert jnp.allclose(out, expected, atol=2e-3, rtol=2e-3), (
        float(jnp.max(jnp.abs(out - expected))))
    print("KERNEL_OK")
</pallas_src>

<mosaic_0001>
module attributes {stable_mosaic.version = 11 : i64} {
  func.func @_linear_attention_kernel(%arg0: i32, %arg1: memref<1x32x256xf32, #tpu.memory_space<vmem>>, %arg2: memref<32x1xf32, #tpu.memory_space<vmem>>, %arg3: memref<384x32xf32, #tpu.memory_space<vmem>>, %arg4: memref<32x128xf32, #tpu.memory_space<vmem>>, %arg5: memref<32x1xf32, #tpu.memory_space<vmem>>, %arg6: memref<32x1xf32, #tpu.memory_space<vmem>>, %arg7: memref<1x32x256xf32, #tpu.memory_space<vmem>>) attributes {dimension_semantics = [#tpu.dimension_semantics<parallel>], iteration_bounds = array<i64: 2>, scalar_prefetch = 0 : i64, scratch_operands = 0 : i64, tpu.core_type = #tpu.core_type<tc>, window_params = [{transform_indices = @transform_0, window_bounds = array<i64: 1, 32, 256>}, {pipeline_mode = #tpu.pipeline_mode<synchronous>, transform_indices = @transform_1, window_bounds = array<i64: 32, 1>}, {pipeline_mode = #tpu.pipeline_mode<synchronous>, transform_indices = @transform_2, window_bounds = array<i64: 384, 32>}, {pipeline_mode = #tpu.pipeline_mode<synchronous>, transform_indices = @transform_3, window_bounds = array<i64: 32, 128>}, {pipeline_mode = #tpu.pipeline_mode<synchronous>, transform_indices = @transform_4, window_bounds = array<i64: 32, 1>}, {pipeline_mode = #tpu.pipeline_mode<synchronous>, transform_indices = @transform_5, window_bounds = array<i64: 32, 1>}, {transform_indices = @transform_6, window_bounds = array<i64: 1, 32, 256>}]} {
    %c0 = arith.constant 0 : index
    %c0_0 = arith.constant 0 : index
    %c0_1 = arith.constant 0 : index
    %0 = vector.load %arg1[%c0, %c0_0, %c0_1] : memref<1x32x256xf32, #tpu.memory_space<vmem>>, vector<1x32x256xf32>
    %1 = vector.shape_cast %0 : vector<1x32x256xf32> to vector<32x256xf32>
    %2 = arith.mulf %1, %1 : vector<32x256xf32>
    %cst = arith.constant dense<0.000000e+00> : vector<256xf32>
    %3 = vector.multi_reduction <add>, %2, %cst [0] : vector<32x256xf32> to vector<256xf32>
    %4 = vector.shape_cast %3 : vector<256xf32> to vector<1x256xf32>
    %cst_2 = arith.constant 1.000000e-24 : f32
    %5 = vector.broadcast %cst_2 : f32 to vector<1x256xf32>
    %6 = arith.maximumf %4, %5 : vector<1x256xf32>
    %7 = math.rsqrt %6 : vector<1x256xf32>
    %8 = vector.broadcast %7 : vector<1x256xf32> to vector<32x256xf32>
    %9 = arith.mulf %1, %8 : vector<32x256xf32>
    %c0_3 = arith.constant 0 : index
    %c0_4 = arith.constant 0 : index
    %10 = vector.load %arg2[%c0_3, %c0_4] : memref<32x1xf32, #tpu.memory_space<vmem>>, vector<32x1xf32>
    %11 = vector.broadcast %10 : vector<32x1xf32> to vector<32x256xf32>
    %12 = arith.mulf %9, %11 : vector<32x256xf32>
    %c0_5 = arith.constant 0 : index
    %c0_6 = arith.constant 0 : index
    %13 = vector.load %arg3[%c0_5, %c0_6] : memref<384x32xf32, #tpu.memory_space<vmem>>, vector<384x32xf32>
    %cst_7 = arith.constant dense<0.000000e+00> : vector<384x256xf32>
    %14 = tpu.matmul %13, %12, %cst_7 {dimension_numbers = #tpu.dot_dimension_numbers<[1], [0], [0], [1], [0, 0, 1, 1], [], []>} : vector<384x32xf32>, vector<32x256xf32>, vector<384x256xf32> -> vector<384x256xf32>
    %15 = vector.extract_strided_slice %14 {offsets = [0, 0], sizes = [128, 256], strides = [1, 1]} : vector<384x256xf32> to vector<128x256xf32>
    %16 = vector.shape_cast %15 : vector<128x256xf32> to vector<4x32x256xf32>
    %17 = vector.extract_strided_slice %14 {offsets = [128, 0], sizes = [128, 256], strides = [1, 1]} : vector<384x256xf32> to vector<128x256xf32>
    %18 = vector.shape_cast %17 : vector<128x256xf32> to vector<4x32x256xf32>
    %19 = vector.extract_strided_slice %14 {offsets = [256, 0], sizes = [128, 256], strides = [1, 1]} : vector<384x256xf32> to vector<128x256xf32>
    %20 = vector.shape_cast %19 : vector<128x256xf32> to vector<4x32x256xf32>
    %cst_8 = arith.constant dense<0xFF800000> : vector<4x256xf32>
    %21 = vector.multi_reduction <maximumf>, %16, %cst_8 [1] : vector<4x32x256xf32> to vector<4x256xf32>
    %22 = vector.shape_cast %21 : vector<4x256xf32> to vector<4x1x256xf32>
    %23 = vector.broadcast %22 : vector<4x1x256xf32> to vector<4x32x256xf32>
    %24 = arith.subf %16, %23 : vector<4x32x256xf32>
    %25 = math.exp %24 : vector<4x32x256xf32>
    %cst_9 = arith.constant dense<0.000000e+00> : vector<4x256xf32>
    %26 = vector.multi_reduction <add>, %25, %cst_9 [1] : vector<4x32x256xf32> to vector<4x256xf32>
    %27 = vector.shape_cast %26 : vector<4x256xf32> to vector<4x1x256xf32>
    %28 = vector.broadcast %27 : vector<4x1x256xf32> to vector<4x32x256xf32>
    %29 = arith.divf %25, %28 : vector<4x32x256xf32>
    %cst_10 = arith.constant dense<0xFF800000> : vector<4x32xf32>
    %30 = vector.multi_reduction <maximumf>, %18, %cst_10 [2] : vector<4x32x256xf32> to vector<4x32xf32>
    %31 = vector.shape_cast %30 : vector<4x32xf32> to vector<4x32x1xf32>
    %32 = vector.broadcast %31 : vector<4x32x1xf32> to vector<4x32x256xf32>
    %33 = arith.subf %18, %32 : vector<4x32x256xf32>
    %34 = math.exp %33 : vector<4x32x256xf32>
    %cst_11 = arith.constant dense<0.000000e+00> : vector<4x32xf32>
    %35 = vector.multi_reduction <add>, %34, %cst_11 [2] : vector<4x32x256xf32> to vector<4x32xf32>
    %36 = vector.shape_cast %35 : vector<4x32xf32> to vector<4x32x1xf32>
    %37 = vector.broadcast %36 : vector<4x32x1xf32> to vector<4x32x256xf32>
    %38 = arith.divf %34, %37 : vector<4x32x256xf32>
    %cst_12 = arith.constant dense<0.000000e+00> : vector<4x32x32xf32>
    %39 = tpu.matmul %38, %20, %cst_12 {dimension_numbers = #tpu.dot_dimension_numbers<[2], [2], [1], [1], [0, 0, 0, 1, 1, 1], [0], [0]>} : vector<4x32x256xf32>, vector<4x32x256xf32>, vector<4x32x32xf32> -> vector<4x32x32xf32>
    %cst_13 = arith.constant dense<0.000000e+00> : vector<4x32x256xf32>
    %40 = tpu.matmul %39, %29, %cst_13 {dimension_numbers = #tpu.dot_dimension_numbers<[1], [1], [2], [2], [0, 0, 0, 2, 1, 2], [0], [0]>} : vector<4x32x32xf32>, vector<4x32x256xf32>, vector<4x32x256xf32> -> vector<4x32x256xf32>
    %41 = vector.shape_cast %40 : vector<4x32x256xf32> to vector<128x256xf32>
    %c0_14 = arith.constant 0 : index
    %c0_15 = arith.constant 0 : index
    %42 = vector.load %arg4[%c0_14, %c0_15] : memref<32x128xf32, #tpu.memory_space<vmem>>, vector<32x128xf32>
    %cst_16 = arith.constant dense<0.000000e+00> : vector<32x256xf32>
    %43 = tpu.matmul %42, %41, %cst_16 {dimension_numbers = #tpu.dot_dimension_numbers<[1], [0], [0], [1], [0, 0, 1, 1], [], []>} : vector<32x128xf32>, vector<128x256xf32>, vector<32x256xf32> -> vector<32x256xf32>
    %c0_17 = arith.constant 0 : index
    %c0_18 = arith.constant 0 : index
    %44 = vector.load %arg5[%c0_17, %c0_18] : memref<32x1xf32, #tpu.memory_space<vmem>>, vector<32x1xf32>
    %45 = vector.broadcast %44 : vector<32x1xf32> to vector<32x256xf32>
    %46 = arith.addf %43, %45 : vector<32x256xf32>
    %47 = arith.mulf %46, %46 : vector<32x256xf32>
    %cst_19 = arith.constant dense<0.000000e+00> : vector<256xf32>
    %48 = vector.multi_reduction <add>, %47, %cst_19 [0] : vector<32x256xf32> to vector<256xf32>
    %49 = vector.shape_cast %48 : vector<256xf32> to vector<1x256xf32>
    %cst_20 = arith.constant 1.000000e-24 : f32
    %50 = vector.broadcast %cst_20 : f32 to vector<1x256xf32>
    %51 = arith.maximumf %49, %50 : vector<1x256xf32>
    %52 = math.rsqrt %51 : vector<1x256xf32>
    %53 = vector.broadcast %52 : vector<1x256xf32> to vector<32x256xf32>
    %54 = arith.mulf %46, %53 : vector<32x256xf32>
    %c0_21 = arith.constant 0 : index
    %c0_22 = arith.constant 0 : index
    %55 = vector.load %arg6[%c0_21, %c0_22] : memref<32x1xf32, #tpu.memory_space<vmem>>, vector<32x1xf32>
    %56 = vector.broadcast %55 : vector<32x1xf32> to vector<32x256xf32>
    %57 = arith.mulf %54, %56 : vector<32x256xf32>
    %c0_23 = arith.constant 0 : index
    %c0_24 = arith.constant 0 : index
    %c0_25 = arith.constant 0 : index
    %58 = vector.load %arg7[%c0_23, %c0_24, %c0_25] : memref<1x32x256xf32, #tpu.memory_space<vmem>>, vector<1x32x256xf32>
    %59 = vector.shape_cast %58 : vector<1x32x256xf32> to vector<32x256xf32>
    %60 = vector.shape_cast %57 : vector<32x256xf32> to vector<1x32x256xf32>
    tpu.vector_store %arg7[%c0_23, %c0_24, %c0_25], %60 {strides = array<i32>} : memref<1x32x256xf32, #tpu.memory_space<vmem>>, vector<1x32x256xf32>,
    return
  }
  func.func @transform_0(%arg0: i32) -> (i32, i32, i32) {
    %c0_i32 = arith.constant 0 : i32
    %c0_i32_0 = arith.constant 0 : i32
    %c0_i32_1 = arith.constant 0 : i32
    return %arg0, %c0_i32, %c0_i32_0 : i32, i32, i32
  }
  func.func @transform_1(%arg0: i32) -> (i32, i32) {
    %c0_i32 = arith.constant 0 : i32
    %c0_i32_0 = arith.constant 0 : i32
    %c0_i32_1 = arith.constant 0 : i32
    return %c0_i32, %c0_i32_0 : i32, i32
  }
  func.func @transform_2(%arg0: i32) -> (i32, i32) {
    %c0_i32 = arith.constant 0 : i32
    %c0_i32_0 = arith.constant 0 : i32
    %c0_i32_1 = arith.constant 0 : i32
    return %c0_i32, %c0_i32_0 : i32, i32
  }
  func.func @transform_3(%arg0: i32) -> (i32, i32) {
    %c0_i32 = arith.constant 0 : i32
    %c0_i32_0 = arith.constant 0 : i32
    %c0_i32_1 = arith.constant 0 : i32
    return %c0_i32, %c0_i32_0 : i32, i32
  }
  func.func @transform_4(%arg0: i32) -> (i32, i32) {
    %c0_i32 = arith.constant 0 : i32
    %c0_i32_0 = arith.constant 0 : i32
    %c0_i32_1 = arith.constant 0 : i32
    return %c0_i32, %c0_i32_0 : i32, i32
  }
  func.func @transform_5(%arg0: i32) -> (i32, i32) {
    %c0_i32 = arith.constant 0 : i32
    %c0_i32_0 = arith.constant 0 : i32
    %c0_i32_1 = arith.constant 0 : i32
    return %c0_i32, %c0_i32_0 : i32, i32
  }
  func.func @transform_6(%arg0: i32) -> (i32, i32, i32) {
    %c0_i32 = arith.constant 0 : i32
    %c0_i32_0 = arith.constant 0 : i32
    %c0_i32_1 = arith.constant 0 : i32
    return %arg0, %c0_i32, %c0_i32_0 : i32, i32, i32
  }
}

</mosaic_0001>

<llo_original>
// kernel: tpu_custom_call.1
$region0: #{tpu_custom_call.1}
  #allocation0 [shape = 'u32[]', space=smem, size = 0x4, offset = 0x4, fixed_abs, tag = 'smem constant byte address 0x4 - core index']
  #allocation1 [shape = 'u32[144,128]{1,0:T(1,128)}', space=vmem, size = 0x12000, scoped, tag = 'internal scratch']
  %s0 = inlined_call_operand.vmem [shape: f32[2,32,256], index: 0, kind: input, shape index: {}]
  %s1 = inlined_call_operand.vmem [shape: f32[32,1], index: 1, kind: input, shape index: {}]
  %s2 = inlined_call_operand.vmem [shape: f32[384,32], index: 2, kind: input, shape index: {}]
  %s3 = inlined_call_operand.vmem [shape: f32[32,128], index: 3, kind: input, shape index: {}]
  %s4 = inlined_call_operand.vmem [shape: f32[32,1], index: 4, kind: input, shape index: {}]
  %s5 = inlined_call_operand.vmem [shape: f32[32,1], index: 5, kind: input, shape index: {}]
  %s6 = inlined_call_operand.hbm [shape: f32[2,32,256], index: 6, kind: output, shape index: {}]
  %s7 = sld [smem:[#allocation0]]
  $region57: #{tpu_custom_call.1} parent=0
    _
  %s9 = ssub.s32 1, %s7
  %s10 = scalar_select 0, %s9, %s7
  $region1: #{tpu_custom_call.1} parent=0
    #allocation2 [shape = 'u8[65536]{0}', space=vmem, size = 0x10000, scoped, tag = 'output window, operand 0']
    #allocation3 [shape = 's32[2]{0}', space=sflag, size = 0x8, scoped, tag = 'scoped memory for tpu_custom_call.1']
    %11 = vsyncpa [#allocation3], 0
    %s12 = scalar_lea.sflag [#allocation3], 1
    %13 = vsyncpa %s12, 0
    loop: start=0, step=1, limit=4
    $region2: #{tpu_custom_call.1} parent=1 // loop_pre_header
      _
    $region3: #{tpu_custom_call.1} parent=1 // loop_header
      %s15 = sphi 0, %s19
      %p16 = scmp.ge.s32.totalorder %s15, 4
      %s25 = sphi 0, %s27
      %s28 = sphi 0, %s25
      %s29 = sphi 0, %s28
      %s45 = sphi 0, %s29
      %s49 = sphi 0, %s49
      %s51 = sphi 0, %s49
      %s52 = sphi 0, %s51
      %s66 = sphi 0, %s52
      %s70 = sphi 0, %s70
      %s72 = sphi 0, %s70
      %s73 = sphi 0, %s72
      %s87 = sphi 0, %s73
      %s91 = sphi 0, %s91
      %s93 = sphi 0, %s91
      %s94 = sphi 0, %s93
      %s108 = sphi 0, %s94
      %s112 = sphi 0, %s112
      %s114 = sphi 0, %s112
      %s115 = sphi 0, %s114
      %s129 = sphi 0, %s115
      %s133 = sphi 0, %s133
      %s135 = sphi 0, %s133
      %s136 = sphi 0, %s135
      %s150 = sphi 0, %s136
      %s156 = sphi 0, %s158
      %s159 = sphi 0, %s156
      %s160 = sphi 0, %s159
      %s176 = sphi 0, %s160
    $region4: #{tpu_custom_call.1} parent=1 // loop_header_branch
      %18 = sbr.rel (%p16) target = $region8
    $region5: #{tpu_custom_call.1} parent=1 // loop_body
      %s20 = ssub.s32 %s15, 1
      %s21 = ssub.s32 %s15, 2
      %s22 = sadd.s32 %s15, 1
      %s23 = ssub.s32 %s15, %s22
      %p24 = scmp.eq.s32.totalorder %s23, 0
      %s26 = sadd.s32 %s25, 1
      %s27 = scalar_select %p24, %s25, %s26
      %p30 = pneg %p24
      %p31 = scmp.eq.s32.totalorder %s15, 1
      %p32 = por %p30, %p31
      %p33 = scmp.ne.s32.totalorder %s25, %s28
      %p34 = scmp.eq.s32.totalorder %s15, 0
      %p35 = por %p33, %p34
      %p36 = scmp.ne.s32.totalorder %s25, %s28
      %p37 = scmp.eq.s32.totalorder %s20, 1
      %p38 = por %p36, %p37
      %p39 = scmp.ne.s32.totalorder %s28, %s29
      %p40 = scmp.eq.s32.totalorder %s20, 0
      %p41 = por %p39, %p40
      %p42 = scmp.ne.s32.totalorder %s28, %s29
      %p43 = scmp.eq.s32.totalorder %s21, 1
      %p44 = por %p42, %p43
      %p46 = scmp.ne.s32.totalorder %s29, %s45
      %p47 = scmp.eq.s32.totalorder %s21, 0
      %p48 = por %p46, %p47
      %s50 = sadd.s32 %s49, 1
      %p53 = scmp.eq.s32.totalorder %s15, 1
      %p54 = scmp.ne.s32.totalorder %s49, %s51
      %p55 = scmp.eq.s32.totalorder %s15, 0
      %p56 = por %p54, %p55
      %p57 = scmp.ne.s32.totalorder %s49, %s51
      %p58 = scmp.eq.s32.totalorder %s20, 1
      %p59 = por %p57, %p58
      %p60 = scmp.ne.s32.totalorder %s51, %s52
      %p61 = scmp.eq.s32.totalorder %s20, 0
      %p62 = por %p60, %p61
      %p63 = scmp.ne.s32.totalorder %s51, %s52
      %p64 = scmp.eq.s32.totalorder %s21, 1
      %p65 = por %p63, %p64
      %p67 = scmp.ne.s32.totalorder %s52, %s66
      %p68 = scmp.eq.s32.totalorder %s21, 0
      %p69 = por %p67, %p68
      %s71 = sadd.s32 %s70, 1
      %p74 = scmp.eq.s32.totalorder %s15, 1
      %p75 = scmp.ne.s32.totalorder %s70, %s72
      %p76 = scmp.eq.s32.totalorder %s15, 0
      %p77 = por %p75, %p76
      %p78 = scmp.ne.s32.totalorder %s70, %s72
      %p79 = scmp.eq.s32.totalorder %s20, 1
      %p80 = por %p78, %p79
      %p81 = scmp.ne.s32.totalorder %s72, %s73
      %p82 = scmp.eq.s32.totalorder %s20, 0
      %p83 = por %p81, %p82
      %p84 = scmp.ne.s32.totalorder %s72, %s73
      %p85 = scmp.eq.s32.totalorder %s21, 1
      %p86 = por %p84, %p85
      %p88 = scmp.ne.s32.totalorder %s73, %s87
      %p89 = scmp.eq.s32.totalorder %s21, 0
      %p90 = por %p88, %p89
      %s92 = sadd.s32 %s91, 1
      %p95 = scmp.eq.s32.totalorder %s15, 1
      %p96 = scmp.ne.s32.totalorder %s91, %s93
      %p97 = scmp.eq.s32.totalorder %s15, 0
      %p98 = por %p96, %p97
      %p99 = scmp.ne.s32.totalorder %s91, %s93
      %p100 = scmp.eq.s32.totalorder %s20, 1
      %p101 = por %p99, %p100
      %p102 = scmp.ne.s32.totalorder %s93, %s94
      %p103 = scmp.eq.s32.totalorder %s20, 0
      %p104 = por %p102, %p103
      %p105 = scmp.ne.s32.totalorder %s93, %s94
      %p106 = scmp.eq.s32.totalorder %s21, 1
      %p107 = por %p105, %p106
      %p109 = scmp.ne.s32.totalorder %s94, %s108
      %p110 = scmp.eq.s32.totalorder %s21, 0
      %p111 = por %p109, %p110
      %s113 = sadd.s32 %s112, 1
      %p116 = scmp.eq.s32.totalorder %s15, 1
      %p117 = scmp.ne.s32.totalorder %s112, %s114
      %p118 = scmp.eq.s32.totalorder %s15, 0
      %p119 = por %p117, %p118
      %p120 = scmp.ne.s32.totalorder %s112, %s114
      %p121 = scmp.eq.s32.totalorder %s20, 1
      %p122 = por %p120, %p121
      %p123 = scmp.ne.s32.totalorder %s114, %s115
      %p124 = scmp.eq.s32.totalorder %s20, 0
      %p125 = por %p123, %p124
      %p126 = scmp.ne.s32.totalorder %s114, %s115
      %p127 = scmp.eq.s32.totalorder %s21, 1
      %p128 = por %p126, %p127
      %p130 = scmp.ne.s32.totalorder %s115, %s129
      %p131 = scmp.eq.s32.totalorder %s21, 0
      %p132 = por %p130, %p131
      %s134 = sadd.s32 %s133, 1
      %p137 = scmp.eq.s32.totalorder %s15, 1
      %p138 = scmp.ne.s32.totalorder %s133, %s135
      %p139 = scmp.eq.s32.totalorder %s15, 0
      %p140 = por %p138, %p139
      %p141 = scmp.ne.s32.totalorder %s133, %s135
      %p142 = scmp.eq.s32.totalorder %s20, 1
      %p143 = por %p141, %p142
      %p144 = scmp.ne.s32.totalorder %s135, %s136
      %p145 = scmp.eq.s32.totalorder %s20, 0
      %p146 = por %p144, %p145
      %p147 = scmp.ne.s32.totalorder %s135, %s136
      %p148 = scmp.eq.s32.totalorder %s21, 1
      %p149 = por %p147, %p148
      %p151 = scmp.ne.s32.totalorder %s136, %s150
      %p152 = scmp.eq.s32.totalorder %s21, 0
      %p153 = por %p151, %p152
      %s154 = ssub.s32 %s15, %s22
      %p155 = scmp.eq.s32.totalorder %s154, 0
      %s157 = sadd.s32 %s156, 1
      %s158 = scalar_select %p155, %s156, %s157
      %p161 = pneg %p155
      %p162 = scmp.eq.s32.totalorder %s15, 1
      %p163 = por %p161, %p162
      %p164 = scmp.ne.s32.totalorder %s156, %s159
      %p165 = scmp.eq.s32.totalorder %s15, 0
      %p166 = por %p164, %p165
      %p167 = scmp.ne.s32.totalorder %s156, %s159
      %p168 = scmp.eq.s32.totalorder %s20, 1
      %p169 = por %p167, %p168
      %p170 = scmp.ne.s32.totalorder %s159, %s160
      %p171 = scmp.eq.s32.totalorder %s20, 0
      %p172 = por %p170, %p171
      %p173 = scmp.ne.s32.totalorder %s159, %s160
      %p174 = scmp.eq.s32.totalorder %s21, 1
      %p175 = por %p173, %p174
      %p177 = scmp.ne.s32.totalorder %s160, %s176
      %p178 = scmp.eq.s32.totalorder %s21, 0
      %p179 = por %p177, %p178
      %p180 = scmp.le.s32.totalorder 1, %s15
      %p181 = scmp.lt.s32.totalorder %s15, 3
      %p182 = pnand %p180, %p181
      %p183 = pneg %p182
      // Predicated region
      $region9: #{tpu_custom_call.1} parent=5 // pred_check
        _
      $region10: #{tpu_custom_call.1} parent=5 // pred_check_branch
        %185 = sbr.rel (%p182) target = $region12
      $region11: #{tpu_custom_call.1} parent=5 // pred_region
        %s186 = ssub.s32 %s15, 1
        // Predicated region
        $region13: #{tpu_custom_call.1} parent=11 // pred_check
          %p187 = pneg %p62
        $region14: #{tpu_custom_call.1} parent=11 // pred_check_branch
          %189 = sbr.rel (%p187) target = $region16
        $region15: #{tpu_custom_call.1} parent=11 // pred_region
          _
        $region16: #{tpu_custom_call.1} parent=11 // pred_fallthru
          _
        // Predicated region
        $region17: #{tpu_custom_call.1} parent=11 // pred_check
          %p190 = pneg %p83
        $region18: #{tpu_custom_call.1} parent=11 // pred_check_branch
          %192 = sbr.rel (%p190) target = $region20
        $region19: #{tpu_custom_call.1} parent=11 // pred_region
          _
        $region20: #{tpu_custom_call.1} parent=11 // pred_fallthru
          _
        // Predicated region
        $region21: #{tpu_custom_call.1} parent=11 // pred_check
          %p193 = pneg %p104
        $region22: #{tpu_custom_call.1} parent=11 // pred_check_branch
          %195 = sbr.rel (%p193) target = $region24
        $region23: #{tpu_custom_call.1} parent=11 // pred_region
          _
        $region24: #{tpu_custom_call.1} parent=11 // pred_fallthru
          _
        // Predicated region
        $region25: #{tpu_custom_call.1} parent=11 // pred_check
          %p196 = pneg %p125
        $region26: #{tpu_custom_call.1} parent=11 // pred_check_branch
          %198 = sbr.rel (%p196) target = $region28
        $region27: #{tpu_custom_call.1} parent=11 // pred_region
          _
        $region28: #{tpu_custom_call.1} parent=11 // pred_fallthru
          _
        // Predicated region
        $region29: #{tpu_custom_call.1} parent=11 // pred_check
          %p199 = pneg %p146
        $region30: #{tpu_custom_call.1} parent=11 // pred_check_branch
          %201 = sbr.rel (%p199) target = $region32
        $region31: #{tpu_custom_call.1} parent=11 // pred_region
          _
        $region32: #{tpu_custom_call.1} parent=11 // pred_fallthru
          _
      $region12: #{tpu_custom_call.1} parent=5 // pred_fallthru
        _
      %p202 = scmp.lt.s32.totalorder %s15, 2
      // Predicated region
      $region33: #{tpu_custom_call.1} parent=5 // pred_check
        %p203 = pneg %p202
      $region34: #{tpu_custom_call.1} parent=5 // pred_check_branch
        %205 = sbr.rel (%p203) target = $region36
      $region35: #{tpu_custom_call.1} parent=5 // pred_region
        // Predicated region
        $region37: #{tpu_custom_call.1} parent=35 // pred_check
          %p206 = pneg %p35
        $region38: #{tpu_custom_call.1} parent=35 // pred_check_branch
          %208 = sbr.rel (%p206) target = $region40
        $region39: #{tpu_custom_call.1} parent=35 // pred_region
          %p209 = scmp.lt.s32.totalorder %s15, 1
          %s210 = scalar_select %p209, %s15, 1
          %s211 = smul.addr %s210, 8
          %s212 = smul.addr %s211, 8
          %s213 = scalar_lea.vmem %s0, %s212
        $region40: #{tpu_custom_call.1} parent=35 // pred_fallthru
          _
      $region36: #{tpu_custom_call.1} parent=5 // pred_fallthru
        _
      %p214 = scmp.le.s32.totalorder 1, %s15
      %p215 = scmp.lt.s32.totalorder %s15, 3
      %p216 = pnand %p214, %p215
      %p217 = pneg %p216
      // Predicated region
      $region41: #{tpu_custom_call.1} parent=5 // pred_check
        _
      $region42: #{tpu_custom_call.1} parent=5 // pred_check_branch
        %219 = sbr.rel (%p216) target = $region44
      $region43: #{tpu_custom_call.1} parent=5 // pred_region
        %s220 = ssub.s32 %s15, 1
        %p221 = scmp.lt.s32.totalorder %s20, 1
        %s222 = scalar_select %p221, %s20, 1
        %s223 = smul.addr %s222, 8
        %s224 = smul.addr %s223, 8
        %s225 = scalar_lea.vmem %s0, %s224
        %p226 = pneg %p41
        %p227 = pneg %p38
        %p228 = pneg %p62
        %p229 = pneg %p59
        %p230 = pneg %p83
        %p231 = pneg %p80
        %p232 = pneg %p104
        %p233 = pneg %p101
        %p234 = pneg %p125
        %p235 = pneg %p122
        %p236 = pneg %p146
        %p237 = pneg %p143
        %p238 = pneg %p172
        %p239 = pneg %p169
        %s240 = sand.u32 %s159, 1
        %s241 = scalar_lea.sflag [#allocation3], %s240
        %s242 = sand.u32 %s159, 1
        %s243 = smul.addr %s242, 64
        %s244 = scalar_lea.vmem [#allocation2], %s243
        %p245 = scmp.lt.s32.totalorder %s20, 1
        %s246 = scalar_select %p245, %s20, 1
        %s247 = smul.addr %s246, 8
        %s248 = smul.addr %s247, 8
        %s249 = scalar_lea.vmem %s0, %s248
        %v250 = vld [vmem:[%s249] sm:$0xff]
        %v251 = vld [vmem:[%s249 + $0x8] sm:$0xff]
        %v252 = vld [vmem:[%s249 + $0x10] sm:$0xff]
        %v253 = vld [vmem:[%s249 + $0x18] sm:$0xff]
        %v254 = vld [vmem:[%s249 + $0x20] sm:$0xff]
        %v255 = vld [vmem:[%s249 + $0x28] sm:$0xff]
        %v256 = vld [vmem:[%s249 + $0x30] sm:$0xff]
        %v257 = vld [vmem:[%s249 + $0x38] sm:$0xff]
        %v258 = vmul.f32 %v250, %v250
        %v259 = vmul.f32 %v251, %v251
        %v260 = vmul.f32 %v252, %v252
        %v261 = vmul.f32 %v253, %v253
        %v262 = vmul.f32 %v254, %v254
        %v263 = vmul.f32 %v255, %v255
        %v264 = vmul.f32 %v256, %v256
        %v265 = vmul.f32 %v257, %v257
        %v266 = vadd.f32 %v258, %v260
        %v267 = vadd.f32 %v266, %v262
        %v268 = vadd.f32 %v267, %v264
        %v269 = vrot.slane %v268, 4
        %v270 = vadd.f32 %v268, %v269
        %v271 = vrot.slane %v270, 2
        %v272 = vadd.f32 %v270, %v271
        %v273 = vrot.slane %v272, 1
        %v274 = vadd.f32 %v272, %v273
        %v275 = vadd.f32 %v259, %v261
        %v276 = vadd.f32 %v275, %v263
        %v277 = vadd.f32 %v276, %v265
        %v278 = vrot.slane %v277, 4
        %v279 = vadd.f32 %v277, %v278
        %v280 = vrot.slane %v279, 2
        %v281 = vadd.f32 %v279, %v280
        %v282 = vrot.slane %v281, 1
        %v283 = vadd.f32 %v281, %v282
        %v284 = vmax.f32 %v274, 1e-24
        %v285 = vmax.f32 %v283, 1e-24
        %v286 = vrsqrt.pop %v284
        %v287 = vrsqrt.pop %v285
        %v288 = vmul.f32 %v250, %v286
        %v289 = vmul.f32 %v251, %v287
        %v290 = vmul.f32 %v252, %v286
        %v291 = vmul.f32 %v253, %v287
        %v292 = vmul.f32 %v254, %v286
        %v293 = vmul.f32 %v255, %v287
        %v294 = vmul.f32 %v256, %v286
        %v295 = vmul.f32 %v257, %v287
        %v296 = vld [vmem:[%s1] sm:$0xff]
        %v297 = vld [vmem:[%s1 + $0x8] sm:$0xff]
        %v298 = vld [vmem:[%s1 + $0x10] sm:$0xff]
        %v299 = vld [vmem:[%s1 + $0x18] sm:$0xff]
        %301 = vset.pattern.permute.xlu0 0
        %302 = vperm.xlu0 %301, %v296
        %v303 = vpop.permute.xlu0 %302
        %306 = vset.pattern.permute.xlu0 0
        %307 = vperm.xlu0 %306, %v297
        %v308 = vpop.permute.xlu0 %307
        %311 = vset.pattern.permute.xlu0 0
        %312 = vperm.xlu0 %311, %v298
        %v313 = vpop.permute.xlu0 %312
        %316 = vset.pattern.permute.xlu0 0
        %317 = vperm.xlu0 %316, %v299
        %v318 = vpop.permute.xlu0 %317
        %v320 = vmul.f32 %v288, %v303
        %v321 = vmul.f32 %v289, %v303
        %v322 = vmul.f32 %v290, %v308
        %v323 = vmul.f32 %v291, %v308
        %v324 = vmul.f32 %v292, %v313
        %v325 = vmul.f32 %v293, %v313
        %v326 = vmul.f32 %v294, %v318
        %v327 = vmul.f32 %v295, %v318
        %v328 = vld [vmem:[%s2] sm:$0xff]
        %v329 = vld [vmem:[%s2 + $0x8] sm:$0xff]
        %v330 = vld [vmem:[%s2 + $0x10] sm:$0xff]
        %v331 = vld [vmem:[%s2 + $0x18] sm:$0xff]
        %v332 = vld [vmem:[%s2 + $0x20] sm:$0xff]
        %v333 = vld [vmem:[%s2 + $0x28] sm:$0xff]
        %v334 = vld [vmem:[%s2 + $0x30] sm:$0xff]
        %v335 = vld [vmem:[%s2 + $0x38] sm:$0xff]
        %v336 = vld [vmem:[%s2 + $0x40] sm:$0xff]
        %v337 = vld [vmem:[%s2 + $0x48] sm:$0xff]
        %v338 = vld [vmem:[%s2 + $0x50] sm:$0xff]
        %v339 = vld [vmem:[%s2 + $0x58] sm:$0xff]
        %v340 = vld [vmem:[%s2 + $0x60] sm:$0xff]
        %v341 = vld [vmem:[%s2 + $0x68] sm:$0xff]
        %v342 = vld [vmem:[%s2 + $0x70] sm:$0xff]
        %v343 = vld [vmem:[%s2 + $0x78] sm:$0xff]
        %v344 = vld [vmem:[%s2 + $0x80] sm:$0xff]
        %v345 = vld [vmem:[%s2 + $0x88] sm:$0xff]
        %v346 = vld [vmem:[%s2 + $0x90] sm:$0xff]
        %v347 = vld [vmem:[%s2 + $0x98] sm:$0xff]
        %v348 = vld [vmem:[%s2 + $0xa0] sm:$0xff]
        %v349 = vld [vmem:[%s2 + $0xa8] sm:$0xff]
        %v350 = vld [vmem:[%s2 + $0xb0] sm:$0xff]
        %v351 = vld [vmem:[%s2 + $0xb8] sm:$0xff]
        %v352 = vld [vmem:[%s2 + $0xc0] sm:$0xff]
        %v353 = vld [vmem:[%s2 + $0xc8] sm:$0xff]
        %v354 = vld [vmem:[%s2 + $0xd0] sm:$0xff]
        %v355 = vld [vmem:[%s2 + $0xd8] sm:$0xff]
        %v356 = vld [vmem:[%s2 + $0xe0] sm:$0xff]
        %v357 = vld [vmem:[%s2 + $0xe8] sm:$0xff]
        %v358 = vld [vmem:[%s2 + $0xf0] sm:$0xff]
        %v359 = vld [vmem:[%s2 + $0xf8] sm:$0xff]
        %v360 = vld [vmem:[%s2 + $0x100] sm:$0xff]
        %v361 = vld [vmem:[%s2 + $0x108] sm:$0xff]
        %v362 = vld [vmem:[%s2 + $0x110] sm:$0xff]
        %v363 = vld [vmem:[%s2 + $0x118] sm:$0xff]
        %v364 = vld [vmem:[%s2 + $0x120] sm:$0xff]
        %v365 = vld [vmem:[%s2 + $0x128] sm:$0xff]
        %v366 = vld [vmem:[%s2 + $0x130] sm:$0xff]
        %v367 = vld [vmem:[%s2 + $0x138] sm:$0xff]
        %v368 = vld [vmem:[%s2 + $0x140] sm:$0xff]
        %v369 = vld [vmem:[%s2 + $0x148] sm:$0xff]
        %v370 = vld [vmem:[%s2 + $0x150] sm:$0xff]
        %v371 = vld [vmem:[%s2 + $0x158] sm:$0xff]
        %v372 = vld [vmem:[%s2 + $0x160] sm:$0xff]
        %v373 = vld [vmem:[%s2 + $0x168] sm:$0xff]
        %v374 = vld [vmem:[%s2 + $0x170] sm:$0xff]
        %v375 = vld [vmem:[%s2 + $0x178] sm:$0xff]
        %vm376 = vcmask 261120
        %v378 = vsel %vm376, %v328, 0
        %v381 = vsel %vm376, %v329, 0
        %v384 = vsel %vm376, %v330, 0
        %v387 = vsel %vm376, %v331, 0
        %v390 = vsel %vm376, %v332, 0
        %v393 = vsel %vm376, %v333, 0
        %v396 = vsel %vm376, %v334, 0
        %v399 = vsel %vm376, %v335, 0
        %v402 = vsel %vm376, %v336, 0
        %v405 = vsel %vm376, %v337, 0
        %v408 = vsel %vm376, %v338, 0
        %v411 = vsel %vm376, %v339, 0
        %v414 = vsel %vm376, %v340, 0
        %v417 = vsel %vm376, %v341, 0
        %v420 = vsel %vm376, %v342, 0
        %v423 = vsel %vm376, %v343, 0
        %v426 = vsel %vm376, %v344, 0
        %v429 = vsel %vm376, %v345, 0
        %v432 = vsel %vm376, %v346, 0
        %v435 = vsel %vm376, %v347, 0
        %v438 = vsel %vm376, %v348, 0
        %v441 = vsel %vm376, %v349, 0
        %v444 = vsel %vm376, %v350, 0
        %v447 = vsel %vm376, %v351, 0
        %v450 = vsel %vm376, %v352, 0
        %v453 = vsel %vm376, %v353, 0
        %v456 = vsel %vm376, %v354, 0
        %v459 = vsel %vm376, %v355, 0
        %v462 = vsel %vm376, %v356, 0
        %v465 = vsel %vm376, %v357, 0
        %v468 = vsel %vm376, %v358, 0
        %v471 = vsel %vm376, %v359, 0
        %v474 = vsel %vm376, %v360, 0
        %v477 = vsel %vm376, %v361, 0
        %v480 = vsel %vm376, %v362, 0
        %v483 = vsel %vm376, %v363, 0
        %v486 = vsel %vm376, %v364, 0
        %v489 = vsel %vm376, %v365, 0
        %v492 = vsel %vm376, %v366, 0
        %v495 = vsel %vm376, %v367, 0
        %v498 = vsel %vm376, %v368, 0
        %v501 = vsel %vm376, %v369, 0
        %v504 = vsel %vm376, %v370, 0
        %v507 = vsel %vm376, %v371, 0
        %v510 = vsel %vm376, %v372, 0
        %v513 = vsel %vm376, %v373, 0
        %v516 = vsel %vm376, %v374, 0
        %v519 = vsel %vm376, %v375, 0
        %521 = vmatprep.subr.mxu0 %v321
        %522 = vmatpush1.msra.mxu0 %v320
        %523 = vmatprep.subr.mxu0 %v323
        %524 = vmatpush1.msra.mxu0 %v322
        %525 = vmatprep.subr.mxu0 %v325
        %526 = vmatpush1.msra.mxu0 %v324
        %527 = vmatprep.subr.mxu0 %v327
        %528 = vmatpush1.msra.mxu0 %v326
        %529 = vmatprep.subr.mxu0 0.0
        %530 = vmatpush1.msra.mxu0 0.0
        %531 = vmatprep.subr.mxu0 0.0
        %532 = vmatpush1.msra.mxu0 0.0
        %533 = vmatprep.subr.mxu0 0.0
        %534 = vmatpush1.msra.mxu0 0.0
        %535 = vmatprep.subr.mxu0 0.0
        %536 = vmatpush1.msra.mxu0 0.0
        %537 = vmatprep.subr.mxu0 0.0
        %538 = vmatpush1.msra.mxu0 0.0
        %539 = vmatprep.subr.mxu0 0.0
        %540 = vmatpush1.msra.mxu0 0.0
        %541 = vmatprep.subr.mxu0 0.0
        %542 = vmatpush1.msra.mxu0 0.0
        %543 = vmatprep.subr.mxu0 0.0
        %544 = vmatpush1.msra.mxu0 0.0
        %545 = vmatprep.subr.mxu0 0.0
        %546 = vmatpush1.msra.mxu0 0.0
        %547 = vmatprep.subr.mxu0 0.0
        %548 = vmatpush1.msra.mxu0 0.0
        %549 = vmatprep.subr.mxu0 0.0
        %550 = vmatpush1.msra.mxu0 0.0
        %551 = vmatprep.subr.mxu0 0.0
        %552 = vmatpush1.msra.mxu0 0.0
        %553 = vmatprep.subr.mxu0 0.0
        %554 = vmatpush1.msra.mxu0 0.0
        %555 = vmatprep.subr.mxu0 0.0
        %556 = vmatpush1.msra.mxu0 0.0
        %557 = vmatprep.subr.mxu0 0.0
        %558 = vmatpush1.msra.mxu0 0.0
        %559 = vmatprep.subr.mxu0 0.0
        %560 = vmatpush1.msra.mxu0 0.0
        %561 = vmatprep.subr.mxu0 0.0
        %562 = vmatpush1.msra.mxu0 0.0
        %563 = vmatprep.subr.mxu0 0.0
        %564 = vmatpush1.msra.mxu0 0.0
        %565 = vmatprep.subr.mxu0 0.0
        %566 = vmatpush1.msra.mxu0 0.0
        %567 = vmatprep.subr.mxu0 0.0
        %568 = vmatpush1.msra.mxu0 0.0
        %569 = vmatprep.subr.mxu0 0.0
        %570 = vmatpush1.msra.mxu0 0.0
        %571 = vmatprep.subr.mxu0 0.0
        %572 = vmatpush1.msra.mxu0 0.0
        %573 = vmatprep.subr.mxu0 0.0
        %574 = vmatpush1.msra.mxu0 0.0
        %575 = vmatprep.subr.mxu0 0.0
        %576 = vmatpush1.msra.mxu0 0.0
        %577 = vmatprep.subr.mxu0 0.0
        %578 = vmatpush1.msra.mxu0 0.0
        %579 = vmatprep.subr.mxu0 0.0
        %580 = vmatpush1.msra.mxu0 0.0
        %581 = vmatprep.subr.mxu0 0.0
        %582 = vmatpush1.msra.mxu0 0.0
        %583 = vmatprep.subr.mxu0 0.0
        %584 = vmatpush1.msra.mxu0 0.0
        %585 = vmatprep.mubr.f32.mxu0 0.0
        %586 = vmatmul.mubr.f32.gmra.mrb[0].mxu0 %v378
        %v587 = vpop.f32.mrb[0].mxu0
        %v588 = vadd.f32 0.0, %v587
        %v589 = vpop.f32.mrb[0].mxu0
        %v590 = vadd.f32 0.0, %v589
        %591 = vmatprep.mubr.f32.mxu0 0.0
        %592 = vmatmul.mubr.f32.gmra.mrb[0].mxu0 %v381
        %v593 = vpop.f32.mrb[0].mxu0
        %v594 = vadd.f32 0.0, %v593
        %v595 = vpop.f32.mrb[0].mxu0
        %v596 = vadd.f32 0.0, %v595
        %597 = vmatprep.mubr.f32.mxu0 0.0
        %598 = vmatmul.mubr.f32.gmra.mrb[0].mxu0 %v384
        %v599 = vpop.f32.mrb[0].mxu0
        %v600 = vadd.f32 0.0, %v599
        %v601 = vpop.f32.mrb[0].mxu0
        %v602 = vadd.f32 0.0, %v601
        %603 = vmatprep.mubr.f32.mxu0 0.0
        %604 = vmatmul.mubr.f32.gmra.mrb[0].mxu0 %v387
        %v605 = vpop.f32.mrb[0].mxu0
        %v606 = vadd.f32 0.0, %v605
        %v607 = vpop.f32.mrb[0].mxu0
        %v608 = vadd.f32 0.0, %v607
        %609 = vmatprep.mubr.f32.mxu0 0.0
        %610 = vmatmul.mubr.f32.gmra.mrb[0].mxu0 %v390
        %v611 = vpop.f32.mrb[0].mxu0
        %v612 = vadd.f32 0.0, %v611
        %v613 = vpop.f32.mrb[0].mxu0
        %v614 = vadd.f32 0.0, %v613
        %615 = vmatprep.mubr.f32.mxu0 0.0
        %616 = vmatmul.mubr.f32.gmra.mrb[0].mxu0 %v393
        %v617 = vpop.f32.mrb[0].mxu0
        %v618 = vadd.f32 0.0, %v617
        %v619 = vpop.f32.mrb[0].mxu0
        %v620 = vadd.f32 0.0, %v619
        %621 = vmatprep.mubr.f32.mxu0 0.0
        %622 = vmatmul.mubr.f32.gmra.mrb[0].mxu0 %v396
        %v623 = vpop.f32.mrb[0].mxu0
        %v624 = vadd.f32 0.0, %v623
        %v625 = vpop.f32.mrb[0].mxu0
        %v626 = vadd.f32 0.0, %v625
        %627 = vmatprep.mubr.f32.mxu0 0.0
        %628 = vmatmul.mubr.f32.gmra.mrb[0].mxu0 %v399
        %v629 = vpop.f32.mrb[0].mxu0
        %v630 = vadd.f32 0.0, %v629
        %v631 = vpop.f32.mrb[0].mxu0
        %v632 = vadd.f32 0.0, %v631
        %633 = vmatprep.mubr.f32.mxu0 0.0
        %634 = vmatmul.mubr.f32.gmra.mrb[0].mxu0 %v402
        %v635 = vpop.f32.mrb[0].mxu0
        %v636 = vadd.f32 0.0, %v635
        %v637 = vpop.f32.mrb[0].mxu0
        %v638 = vadd.f32 0.0, %v637
        %639 = vmatprep.mubr.f32.mxu0 0.0
        %640 = vmatmul.mubr.f32.gmra.mrb[0].mxu0 %v405
        %v641 = vpop.f32.mrb[0].mxu0
        %v642 = vadd.f32 0.0, %v641
        %v643 = vpop.f32.mrb[0].mxu0
        %v644 = vadd.f32 0.0, %v643
        %645 = vmatprep.mubr.f32.mxu0 0.0
        %646 = vmatmul.mubr.f32.gmra.mrb[0].mxu0 %v408
        %v647 = vpop.f32.mrb[0].mxu0
        %v648 = vadd.f32 0.0, %v647
        %v649 = vpop.f32.mrb[0].mxu0
        %v650 = vadd.f32 0.0, %v649
        %651 = vmatprep.mubr.f32.mxu0 0.0
        %652 = vmatmul.mubr.f32.gmra.mrb[0].mxu0 %v411
        %v653 = vpop.f32.mrb[0].mxu0
        %v654 = vadd.f32 0.0, %v653
        %v655 = vpop.f32.mrb[0].mxu0
        %v656 = vadd.f32 0.0, %v655
        %657 = vmatprep.mubr.f32.mxu0 0.0
        %658 = vmatmul.mubr.f32.gmra.mrb[0].mxu0 %v414
        %v659 = vpop.f32.mrb[0].mxu0
        %v660 = vadd.f32 0.0, %v659
        %v661 = vpop.f32.mrb[0].mxu0
        %v662 = vadd.f32 0.0, %v661
        %663 = vmatprep.mubr.f32.mxu0 0.0
        %664 = vmatmul.mubr.f32.gmra.mrb[0].mxu0 %v417
        %v665 = vpop.f32.mrb[0].mxu0
        %v666 = vadd.f32 0.0, %v665
        %v667 = vpop.f32.mrb[0].mxu0
        %v668 = vadd.f32 0.0, %v667
        %669 = vmatprep.mubr.f32.mxu0 0.0
        %670 = vmatmul.mubr.f32.gmra.mrb[0].mxu0 %v420
        %v671 = vpop.f32.mrb[0].mxu0
        %v672 = vadd.f32 0.0, %v671
        %v673 = vpop.f32.mrb[0].mxu0
        %v674 = vadd.f32 0.0, %v673
        %675 = vmatprep.mubr.f32.mxu0 0.0
        %676 = vmatmul.mubr.f32.gmra.mrb[0].mxu0 %v423
        %v677 = vpop.f32.mrb[0].mxu0
        %v678 = vadd.f32 0.0, %v677
        %v679 = vpop.f32.mrb[0].mxu0
        %v680 = vadd.f32 0.0, %v679
        %681 = vmatprep.mubr.f32.mxu0 0.0
        %682 = vmatmul.mubr.f32.gmra.mrb[0].mxu0 %v426
        %v683 = vpop.f32.mrb[0].mxu0
        %v684 = vadd.f32 0.0, %v683
        %v685 = vpop.f32.mrb[0].mxu0
        %v686 = vadd.f32 0.0, %v685
        %687 = vmatprep.mubr.f32.mxu0 0.0
        %688 = vmatmul.mubr.f32.gmra.mrb[0].mxu0 %v429
        %v689 = vpop.f32.mrb[0].mxu0
        %v690 = vadd.f32 0.0, %v689
        %v691 = vpop.f32.mrb[0].mxu0
        %v692 = vadd.f32 0.0, %v691
        %693 = vmatprep.mubr.f32.mxu0 0.0
        %694 = vmatmul.mubr.f32.gmra.mrb[0].mxu0 %v432
        %v695 = vpop.f32.mrb[0].mxu0
        %v696 = vadd.f32 0.0, %v695
        %v697 = vpop.f32.mrb[0].mxu0
        %v698 = vadd.f32 0.0, %v697
        %699 = vmatprep.mubr.f32.mxu0 0.0
        %700 = vmatmul.mubr.f32.gmra.mrb[0].mxu0 %v435
        %v701 = vpop.f32.mrb[0].mxu0
        %v702 = vadd.f32 0.0, %v701
        %v703 = vpop.f32.mrb[0].mxu0
        %v704 = vadd.f32 0.0, %v703
        %705 = vmatprep.mubr.f32.mxu0 0.0
        %706 = vmatmul.mubr.f32.gmra.mrb[0].mxu0 %v438
        %v707 = vpop.f32.mrb[0].mxu0
        %v708 = vadd.f32 0.0, %v707
        %v709 = vpop.f32.mrb[0].mxu0
        %v710 = vadd.f32 0.0, %v709
        %711 = vmatprep.mubr.f32.mxu0 0.0
        %712 = vmatmul.mubr.f32.gmra.mrb[0].mxu0 %v441
        %v713 = vpop.f32.mrb[0].mxu0
        %v714 = vadd.f32 0.0, %v713
        %v715 = vpop.f32.mrb[0].mxu0
        %v716 = vadd.f32 0.0, %v715
        %717 = vmatprep.mubr.f32.mxu0 0.0
        %718 = vmatmul.mubr.f32.gmra.mrb[0].mxu0 %v444
        %v719 = vpop.f32.mrb[0].mxu0
        %v720 = vadd.f32 0.0, %v719
        %v721 = vpop.f32.mrb[0].mxu0
        %v722 = vadd.f32 0.0, %v721
        %723 = vmatprep.mubr.f32.mxu0 0.0
        %724 = vmatmul.mubr.f32.gmra.mrb[0].mxu0 %v447
        %v725 = vpop.f32.mrb[0].mxu0
        %v726 = vadd.f32 0.0, %v725
        %v727 = vpop.f32.mrb[0].mxu0
        %v728 = vadd.f32 0.0, %v727
        %729 = vmatprep.mubr.f32.mxu0 0.0
        %730 = vmatmul.mubr.f32.gmra.mrb[0].mxu0 %v450
        %v731 = vpop.f32.mrb[0].mxu0
        %v732 = vadd.f32 0.0, %v731
        %v733 = vpop.f32.mrb[0].mxu0
        %v734 = vadd.f32 0.0, %v733
        %735 = vmatprep.mubr.f32.mxu0 0.0
        %736 = vmatmul.mubr.f32.gmra.mrb[0].mxu0 %v453
        %v737 = vpop.f32.mrb[0].mxu0
        %v738 = vadd.f32 0.0, %v737
        %v739 = vpop.f32.mrb[0].mxu0
        %v740 = vadd.f32 0.0, %v739
        %741 = vmatprep.mubr.f32.mxu0 0.0
        %742 = vmatmul.mubr.f32.gmra.mrb[0].mxu0 %v456
        %v743 = vpop.f32.mrb[0].mxu0
        %v744 = vadd.f32 0.0, %v743
        %v745 = vpop.f32.mrb[0].mxu0
        %v746 = vadd.f32 0.0, %v745
        %747 = vmatprep.mubr.f32.mxu0 0.0
        %748 = vmatmul.mubr.f32.gmra.mrb[0].mxu0 %v459
        %v749 = vpop.f32.mrb[0].mxu0
        %v750 = vadd.f32 0.0, %v749
        %v751 = vpop.f32.mrb[0].mxu0
        %v752 = vadd.f32 0.0, %v751
        %753 = vmatprep.mubr.f32.mxu0 0.0
        %754 = vmatmul.mubr.f32.gmra.mrb[0].mxu0 %v462
        %v755 = vpop.f32.mrb[0].mxu0
        %v756 = vadd.f32 0.0, %v755
        %v757 = vpop.f32.mrb[0].mxu0
        %v758 = vadd.f32 0.0, %v757
        %759 = vmatprep.mubr.f32.mxu0 0.0
        %760 = vmatmul.mubr.f32.gmra.mrb[0].mxu0 %v465
        %v761 = vpop.f32.mrb[0].mxu0
        %v762 = vadd.f32 0.0, %v761
        %v763 = vpop.f32.mrb[0].mxu0
        %v764 = vadd.f32 0.0, %v763
        %765 = vmatprep.mubr.f32.mxu0 0.0
        %766 = vmatmul.mubr.f32.gmra.mrb[0].mxu0 %v468
        %v767 = vpop.f32.mrb[0].mxu0
        %v768 = vadd.f32 0.0, %v767
        %v769 = vpop.f32.mrb[0].mxu0
        %v770 = vadd.f32 0.0, %v769
        %771 = vmatprep.mubr.f32.mxu0 0.0
        %772 = vmatmul.mubr.f32.gmra.mrb[0].mxu0 %v471
        %v773 = vpop.f32.mrb[0].mxu0
        %v774 = vadd.f32 0.0, %v773
        %v775 = vpop.f32.mrb[0].mxu0
        %v776 = vadd.f32 0.0, %v775
        %777 = vmatprep.mubr.f32.mxu0 0.0
        %778 = vmatmul.mubr.f32.gmra.mrb[0].mxu0 %v474
        %v779 = vpop.f32.mrb[0].mxu0
        %v780 = vadd.f32 0.0, %v779
        %v781 = vpop.f32.mrb[0].mxu0
        %v782 = vadd.f32 0.0, %v781
        %783 = vmatprep.mubr.f32.mxu0 0.0
        %784 = vmatmul.mubr.f32.gmra.mrb[0].mxu0 %v477
        %v785 = vpop.f32.mrb[0].mxu0
        %v786 = vadd.f32 0.0, %v785
        %v787 = vpop.f32.mrb[0].mxu0
        %v788 = vadd.f32 0.0, %v787
        %789 = vmatprep.mubr.f32.mxu0 0.0
        %790 = vmatmul.mubr.f32.gmra.mrb[0].mxu0 %v480
        %v791 = vpop.f32.mrb[0].mxu0
        %v792 = vadd.f32 0.0, %v791
        %v793 = vpop.f32.mrb[0].mxu0
        %v794 = vadd.f32 0.0, %v793
        %795 = vmatprep.mubr.f32.mxu0 0.0
        %796 = vmatmul.mubr.f32.gmra.mrb[0].mxu0 %v483
        %v797 = vpop.f32.mrb[0].mxu0
        %v798 = vadd.f32 0.0, %v797
        %v799 = vpop.f32.mrb[0].mxu0
        %v800 = vadd.f32 0.0, %v799
        %801 = vmatprep.mubr.f32.mxu0 0.0
        %802 = vmatmul.mubr.f32.gmra.mrb[0].mxu0 %v486
        %v803 = vpop.f32.mrb[0].mxu0
        %v804 = vadd.f32 0.0, %v803
        %v805 = vpop.f32.mrb[0].mxu0
        %v806 = vadd.f32 0.0, %v805
        %807 = vmatprep.mubr.f32.mxu0 0.0
        %808 = vmatmul.mubr.f32.gmra.mrb[0].mxu0 %v489
        %v809 = vpop.f32.mrb[0].mxu0
        %v810 = vadd.f32 0.0, %v809
        %v811 = vpop.f32.mrb[0].mxu0
        %v812 = vadd.f32 0.0, %v811
        %813 = vmatprep.mubr.f32.mxu0 0.0
        %814 = vmatmul.mubr.f32.gmra.mrb[0].mxu0 %v492
        %v815 = vpop.f32.mrb[0].mxu0
        %v816 = vadd.f32 0.0, %v815
        %v817 = vpop.f32.mrb[0].mxu0
        %v818 = vadd.f32 0.0, %v817
        %819 = vmatprep.mubr.f32.mxu0 0.0
        %820 = vmatmul.mubr.f32.gmra.mrb[0].mxu0 %v495
        %v821 = vpop.f32.mrb[0].mxu0
        %v822 = vadd.f32 0.0, %v821
        %v823 = vpop.f32.mrb[0].mxu0
        %v824 = vadd.f32 0.0, %v823
        %825 = vmatprep.mubr.f32.mxu0 0.0
        %826 = vmatmul.mubr.f32.gmra.mrb[0].mxu0 %v498
        %v827 = vpop.f32.mrb[0].mxu0
        %v828 = vadd.f32 0.0, %v827
        %v829 = vpop.f32.mrb[0].mxu0
        %v830 = vadd.f32 0.0, %v829
        %831 = vmatprep.mubr.f32.mxu0 0.0
        %832 = vmatmul.mubr.f32.gmra.mrb[0].mxu0 %v501
        %v833 = vpop.f32.mrb[0].mxu0
        %v834 = vadd.f32 0.0, %v833
        %v835 = vpop.f32.mrb[0].mxu0
        %v836 = vadd.f32 0.0, %v835
        %837 = vmatprep.mubr.f32.mxu0 0.0
        %838 = vmatmul.mubr.f32.gmra.mrb[0].mxu0 %v504
        %v839 = vpop.f32.mrb[0].mxu0
        %v840 = vadd.f32 0.0, %v839
        %v841 = vpop.f32.mrb[0].mxu0
        %v842 = vadd.f32 0.0, %v841
        %843 = vmatprep.mubr.f32.mxu0 0.0
        %844 = vmatmul.mubr.f32.gmra.mrb[0].mxu0 %v507
        %v845 = vpop.f32.mrb[0].mxu0
        %v846 = vadd.f32 0.0, %v845
        %v847 = vpop.f32.mrb[0].mxu0
        %v848 = vadd.f32 0.0, %v847
        %849 = vmatprep.mubr.f32.mxu0 0.0
        %850 = vmatmul.mubr.f32.gmra.mrb[0].mxu0 %v510
        %v851 = vpop.f32.mrb[0].mxu0
        %v852 = vadd.f32 0.0, %v851
        %v853 = vpop.f32.mrb[0].mxu0
        %v854 = vadd.f32 0.0, %v853
        %855 = vmatprep.mubr.f32.mxu0 0.0
        %856 = vmatmul.mubr.f32.gmra.mrb[0].mxu0 %v513
        %v857 = vpop.f32.mrb[0].mxu0
        %v858 = vadd.f32 0.0, %v857
        %v859 = vpop.f32.mrb[0].mxu0
        %v860 = vadd.f32 0.0, %v859
        %861 = vmatprep.mubr.f32.mxu0 0.0
        %862 = vmatmul.mubr.f32.gmra.mrb[0].mxu0 %v516
        %v863 = vpop.f32.mrb[0].mxu0
        %v864 = vadd.f32 0.0, %v863
        %v865 = vpop.f32.mrb[0].mxu0
        %v866 = vadd.f32 0.0, %v865
        %867 = vmatprep.mubr.f32.mxu0 0.0
        %868 = vmatmul.mubr.f32.gmra.mrb[0].mxu0 %v519
        %v869 = vpop.f32.mrb[0].mxu0
        %v870 = vadd.f32 0.0, %v869
        %v871 = vpop.f32.mrb[0].mxu0
        %v872 = vadd.f32 0.0, %v871
        %873 = vdwg.mxu0
        %v874 = vmax.f32 %v588, %v594
        %v875 = vmax.f32 %v874, %v600
        %v876 = vmax.f32 %v875, %v606
        %v877 = vrot.slane %v876, 4
        %v878 = vmax.f32 %v876, %v877
        %v879 = vrot.slane %v878, 2
        %v880 = vmax.f32 %v878, %v879
        %v881 = vrot.slane %v880, 1
        %v882 = vmax.f32 %v880, %v881
        %v883 = vmax.f32 %v590, %v596
        %v884 = vmax.f32 %v883, %v602
        %v885 = vmax.f32 %v884, %v608
        %v886 = vrot.slane %v885, 4
        %v887 = vmax.f32 %v885, %v886
        %v888 = vrot.slane %v887, 2
        %v889 = vmax.f32 %v887, %v888
        %v890 = vrot.slane %v889, 1
        %v891 = vmax.f32 %v889, %v890
        %v892 = vmax.f32 %v612, %v618
        %v893 = vmax.f32 %v892, %v624
        %v894 = vmax.f32 %v893, %v630
        %v895 = vrot.slane %v894, 4
        %v896 = vmax.f32 %v894, %v895
        %v897 = vrot.slane %v896, 2
        %v898 = vmax.f32 %v896, %v897
        %v899 = vrot.slane %v898, 1
        %v900 = vmax.f32 %v898, %v899
        %v901 = vmax.f32 %v614, %v620
        %v902 = vmax.f32 %v901, %v626
        %v903 = vmax.f32 %v902, %v632
        %v904 = vrot.slane %v903, 4
        %v905 = vmax.f32 %v903, %v904
        %v906 = vrot.slane %v905, 2
        %v907 = vmax.f32 %v905, %v906
        %v908 = vrot.slane %v907, 1
        %v909 = vmax.f32 %v907, %v908
        %v910 = vmax.f32 %v636, %v642
        %v911 = vmax.f32 %v910, %v648
        %v912 = vmax.f32 %v911, %v654
        %v913 = vrot.slane %v912, 4
        %v914 = vmax.f32 %v912, %v913
        %v915 = vrot.slane %v914, 2
        %v916 = vmax.f32 %v914, %v915
        %v917 = vrot.slane %v916, 1
        %v918 = vmax.f32 %v916, %v917
        %v919 = vmax.f32 %v638, %v644
        %v920 = vmax.f32 %v919, %v650
        %v921 = vmax.f32 %v920, %v656
        %v922 = vrot.slane %v921, 4
        %v923 = vmax.f32 %v921, %v922
        %v924 = vrot.slane %v923, 2
        %v925 = vmax.f32 %v923, %v924
        %v926 = vrot.slane %v925, 1
        %v927 = vmax.f32 %v925, %v926
        %v928 = vmax.f32 %v660, %v666
        %v929 = vmax.f32 %v928, %v672
        %v930 = vmax.f32 %v929, %v678
        %v931 = vrot.slane %v930, 4
        %v932 = vmax.f32 %v930, %v931
        %v933 = vrot.slane %v932, 2
        %v934 = vmax.f32 %v932, %v933
        %v935 = vrot.slane %v934, 1
        %v936 = vmax.f32 %v934, %v935
        %v937 = vmax.f32 %v662, %v668
        %v938 = vmax.f32 %v937, %v674
        %v939 = vmax.f32 %v938, %v680
        %v940 = vrot.slane %v939, 4
        %v941 = vmax.f32 %v939, %v940
        %v942 = vrot.slane %v941, 2
        %v943 = vmax.f32 %v941, %v942
        %v944 = vrot.slane %v943, 1
        %v945 = vmax.f32 %v943, %v944
        %v946 = vsub.f32 %v588, %v882
        %v947 = vsub.f32 %v590, %v891
        %v948 = vsub.f32 %v594, %v882
        %v949 = vsub.f32 %v596, %v891
        %v950 = vsub.f32 %v600, %v882
        %v951 = vsub.f32 %v602, %v891
        %v952 = vsub.f32 %v606, %v882
        %v953 = vsub.f32 %v608, %v891
        %v954 = vsub.f32 %v612, %v900
        %v955 = vsub.f32 %v614, %v909
        %v956 = vsub.f32 %v618, %v900
        %v957 = vsub.f32 %v620, %v909
        %v958 = vsub.f32 %v624, %v900
        %v959 = vsub.f32 %v626, %v909
        %v960 = vsub.f32 %v630, %v900
        %v961 = vsub.f32 %v632, %v909
        %v962 = vsub.f32 %v636, %v918
        %v963 = vsub.f32 %v638, %v927
        %v964 = vsub.f32 %v642, %v918
        %v965 = vsub.f32 %v644, %v927
        %v966 = vsub.f32 %v648, %v918
        %v967 = vsub.f32 %v650, %v927
        %v968 = vsub.f32 %v654, %v918
        %v969 = vsub.f32 %v656, %v927
        %v970 = vsub.f32 %v660, %v936
        %v971 = vsub.f32 %v662, %v945
        %v972 = vsub.f32 %v666, %v936
        %v973 = vsub.f32 %v668, %v945
        %v974 = vsub.f32 %v672, %v936
        %v975 = vsub.f32 %v674, %v945
        %v976 = vsub.f32 %v678, %v936
        %v977 = vsub.f32 %v680, %v945
        %v978 = vmul.f32 %v946, 1.442695
        %v979 = vpow.pop %v978
        %v980 = vmul.f32 %v947, 1.442695
        %v981 = vpow.pop %v980
        %v982 = vmul.f32 %v948, 1.442695
        %v983 = vpow.pop %v982
        %v984 = vmul.f32 %v949, 1.442695
        %v985 = vpow.pop %v984
        %v986 = vmul.f32 %v950, 1.442695
        %v987 = vpow.pop %v986
        %v988 = vmul.f32 %v951, 1.442695
        %v989 = vpow.pop %v988
        %v990 = vmul.f32 %v952, 1.442695
        %v991 = vpow.pop %v990
        %v992 = vmul.f32 %v953, 1.442695
        %v993 = vpow.pop %v992
        %v994 = vmul.f32 %v954, 1.442695
        %v995 = vpow.pop %v994
        %v996 = vmul.f32 %v955, 1.442695
        %v997 = vpow.pop %v996
        %v998 = vmul.f32 %v956, 1.442695
        %v999 = vpow.pop %v998
        %v1000 = vmul.f32 %v957, 1.442695
        %v1001 = vpow.pop %v1000
        %v1002 = vmul.f32 %v958, 1.442695
        %v1003 = vpow.pop %v1002
        %v1004 = vmul.f32 %v959, 1.442695
        %v1005 = vpow.pop %v1004
        %v1006 = vmul.f32 %v960, 1.442695
        %v1007 = vpow.pop %v1006
        %v1008 = vmul.f32 %v961, 1.442695
        %v1009 = vpow.pop %v1008
        %v1010 = vmul.f32 %v962, 1.442695
        %v1011 = vpow.pop %v1010
        %v1012 = vmul.f32 %v963, 1.442695
        %v1013 = vpow.pop %v1012
        %v1014 = vmul.f32 %v964, 1.442695
        %v1015 = vpow.pop %v1014
        %v1016 = vmul.f32 %v965, 1.442695
        %v1017 = vpow.pop %v1016
        %v1018 = vmul.f32 %v966, 1.442695
        %v1019 = vpow.pop %v1018
        %v1020 = vmul.f32 %v967, 1.442695
        %v1021 = vpow.pop %v1020
        %v1022 = vmul.f32 %v968, 1.442695
        %v1023 = vpow.pop %v1022
        %v1024 = vmul.f32 %v969, 1.442695
        %v1025 = vpow.pop %v1024
        %v1026 = vmul.f32 %v970, 1.442695
        %v1027 = vpow.pop %v1026
        %v1028 = vmul.f32 %v971, 1.442695
        %v1029 = vpow.pop %v1028
        %v1030 = vmul.f32 %v972, 1.442695
        %v1031 = vpow.pop %v1030
        %v1032 = vmul.f32 %v973, 1.442695
        %v1033 = vpow.pop %v1032
        %v1034 = vmul.f32 %v974, 1.442695
        %v1035 = vpow.pop %v1034
        %v1036 = vmul.f32 %v975, 1.442695
        %v1037 = vpow.pop %v1036
        %v1038 = vmul.f32 %v976, 1.442695
        %v1039 = vpow.pop %v1038
        %v1040 = vmul.f32 %v977, 1.442695
        %v1041 = vpow.pop %v1040
        %v1042 = vadd.f32 %v979, %v983
        %v1043 = vadd.f32 %v1042, %v987
        %v1044 = vadd.f32 %v1043, %v991
        %v1045 = vrot.slane %v1044, 4
        %v1046 = vadd.f32 %v1044, %v1045
        %v1047 = vrot.slane %v1046, 2
        %v1048 = vadd.f32 %v1046, %v1047
        %v1049 = vrot.slane %v1048, 1
        %v1050 = vadd.f32 %v1048, %v1049
        %v1051 = vadd.f32 %v981, %v985
        %v1052 = vadd.f32 %v1051, %v989
        %v1053 = vadd.f32 %v1052, %v993
        %v1054 = vrot.slane %v1053, 4
        %v1055 = vadd.f32 %v1053, %v1054
        %v1056 = vrot.slane %v1055, 2
        %v1057 = vadd.f32 %v1055, %v1056
        %v1058 = vrot.slane %v1057, 1
        %v1059 = vadd.f32 %v1057, %v1058
        %v1060 = vadd.f32 %v995, %v999
        %v1061 = vadd.f32 %v1060, %v1003
        %v1062 = vadd.f32 %v1061, %v1007
        %v1063 = vrot.slane %v1062, 4
        %v1064 = vadd.f32 %v1062, %v1063
        %v1065 = vrot.slane %v1064, 2
        %v1066 = vadd.f32 %v1064, %v1065
        %v1067 = vrot.slane %v1066, 1
        %v1068 = vadd.f32 %v1066, %v1067
        %v1069 = vadd.f32 %v997, %v1001
        %v1070 = vadd.f32 %v1069, %v1005
        %v1071 = vadd.f32 %v1070, %v1009
        %v1072 = vrot.slane %v1071, 4
        %v1073 = vadd.f32 %v1071, %v1072
        %v1074 = vrot.slane %v1073, 2
        %v1075 = vadd.f32 %v1073, %v1074
        %v1076 = vrot.slane %v1075, 1
        %v1077 = vadd.f32 %v1075, %v1076
        %v1078 = vadd.f32 %v1011, %v1015
        %v1079 = vadd.f32 %v1078, %v1019
        %v1080 = vadd.f32 %v1079, %v1023
        %v1081 = vrot.slane %v1080, 4
        %v1082 = vadd.f32 %v1080, %v1081
        %v1083 = vrot.slane %v1082, 2
        %v1084 = vadd.f32 %v1082, %v1083
        %v1085 = vrot.slane %v1084, 1
        %v1086 = vadd.f32 %v1084, %v1085
        %v1087 = vadd.f32 %v1013, %v1017
        %v1088 = vadd.f32 %v1087, %v1021
        %v1089 = vadd.f32 %v1088, %v1025
        %v1090 = vrot.slane %v1089, 4
        %v1091 = vadd.f32 %v1089, %v1090
        %v1092 = vrot.slane %v1091, 2
        %v1093 = vadd.f32 %v1091, %v1092
        %v1094 = vrot.slane %v1093, 1
        %v1095 = vadd.f32 %v1093, %v1094
        %v1096 = vadd.f32 %v1027, %v1031
        %v1097 = vadd.f32 %v1096, %v1035
        %v1098 = vadd.f32 %v1097, %v1039
        %v1099 = vrot.slane %v1098, 4
        %v1100 = vadd.f32 %v1098, %v1099
        %v1101 = vrot.slane %v1100, 2
        %v1102 = vadd.f32 %v1100, %v1101
        %v1103 = vrot.slane %v1102, 1
        %v1104 = vadd.f32 %v1102, %v1103
        %v1105 = vadd.f32 %v1029, %v1033
        %v1106 = vadd.f32 %v1105, %v1037
        %v1107 = vadd.f32 %v1106, %v1041
        %v1108 = vrot.slane %v1107, 4
        %v1109 = vadd.f32 %v1107, %v1108
        %v1110 = vrot.slane %v1109, 2
        %v1111 = vadd.f32 %v1109, %v1110
        %v1112 = vrot.slane %v1111, 1
        %v1113 = vadd.f32 %v1111, %v1112
        %v1114 = vrcp.pop %v1050
        %v1115 = vmul.f32 %v979, %v1114
        %v1116 = vrcp.pop %v1059
        %v1117 = vmul.f32 %v981, %v1116
        %v1118 = vmul.f32 %v983, %v1114
        %v1119 = vmul.f32 %v985, %v1116
        %v1120 = vmul.f32 %v987, %v1114
        %v1121 = vmul.f32 %v989, %v1116
        %v1122 = vmul.f32 %v991, %v1114
        %v1123 = vmul.f32 %v993, %v1116
        %v1124 = vrcp.pop %v1068
        %v1125 = vmul.f32 %v995, %v1124
        %v1126 = vrcp.pop %v1077
        %v1127 = vmul.f32 %v997, %v1126
        %v1128 = vmul.f32 %v999, %v1124
        %v1129 = vmul.f32 %v1001, %v1126
        %v1130 = vmul.f32 %v1003, %v1124
        %v1131 = vmul.f32 %v1005, %v1126
        %v1132 = vmul.f32 %v1007, %v1124
        %v1133 = vmul.f32 %v1009, %v1126
        %v1134 = vrcp.pop %v1086
        %v1135 = vmul.f32 %v1011, %v1134
        %v1136 = vrcp.pop %v1095
        %v1137 = vmul.f32 %v1013, %v1136
        %v1138 = vmul.f32 %v1015, %v1134
        %v1139 = vmul.f32 %v1017, %v1136
        %v1140 = vmul.f32 %v1019, %v1134
        %v1141 = vmul.f32 %v1021, %v1136
        %v1142 = vmul.f32 %v1023, %v1134
        %v1143 = vmul.f32 %v1025, %v1136
        %v1144 = vrcp.pop %v1104
        %v1145 = vmul.f32 %v1027, %v1144
        %v1146 = vrcp.pop %v1113
        %v1147 = vmul.f32 %v1029, %v1146
        %v1148 = vmul.f32 %v1031, %v1144
        %v1149 = vmul.f32 %v1033, %v1146
        %v1150 = vmul.f32 %v1035, %v1144
        %v1151 = vmul.f32 %v1037, %v1146
        %v1152 = vmul.f32 %v1039, %v1144
        %v1153 = vmul.f32 %v1041, %v1146
        %v1154 = vmax.f32 %v684, %v686
        %1155 = vmax.xlane.f32.xlu0 %v1154
        %v1156 = vpop.xlane.xlu0 %1155
        %v1157 = vmax.f32 %v690, %v692
        %1158 = vmax.xlane.f32.xlu0 %v1157
        %v1159 = vpop.xlane.xlu0 %1158
        %v1160 = vmax.f32 %v696, %v698
        %1161 = vmax.xlane.f32.xlu0 %v1160
        %v1162 = vpop.xlane.xlu0 %1161
        %v1163 = vmax.f32 %v702, %v704
        %1164 = vmax.xlane.f32.xlu0 %v1163
        %v1165 = vpop.xlane.xlu0 %1164
        %v1166 = vmax.f32 %v708, %v710
        %1167 = vmax.xlane.f32.xlu0 %v1166
        %v1168 = vpop.xlane.xlu0 %1167
        %v1169 = vmax.f32 %v714, %v716
        %1170 = vmax.xlane.f32.xlu0 %v1169
        %v1171 = vpop.xlane.xlu0 %1170
        %v1172 = vmax.f32 %v720, %v722
        %1173 = vmax.xlane.f32.xlu0 %v1172
        %v1174 = vpop.xlane.xlu0 %1173
        %v1175 = vmax.f32 %v726, %v728
        %1176 = vmax.xlane.f32.xlu0 %v1175
        %v1177 = vpop.xlane.xlu0 %1176
        %v1178 = vmax.f32 %v732, %v734
        %1179 = vmax.xlane.f32.xlu0 %v1178
        %v1180 = vpop.xlane.xlu0 %1179
        %v1181 = vmax.f32 %v738, %v740
        %1182 = vmax.xlane.f32.xlu0 %v1181
        %v1183 = vpop.xlane.xlu0 %1182
        %v1184 = vmax.f32 %v744, %v746
        %1185 = vmax.xlane.f32.xlu0 %v1184
        %v1186 = vpop.xlane.xlu0 %1185
        %v1187 = vmax.f32 %v750, %v752
        %1188 = vmax.xlane.f32.xlu0 %v1187
        %v1189 = vpop.xlane.xlu0 %1188
        %v1190 = vmax.f32 %v756, %v758
        %1191 = vmax.xlane.f32.xlu0 %v1190
        %v1192 = vpop.xlane.xlu0 %1191
        %v1193 = vmax.f32 %v762, %v764
        %1194 = vmax.xlane.f32.xlu0 %v1193
        %v1195 = vpop.xlane.xlu0 %1194
        %v1196 = vmax.f32 %v768, %v770
        %1197 = vmax.xlane.f32.xlu0 %v1196
        %v1198 = vpop.xlane.xlu0 %1197
        %v1199 = vmax.f32 %v774, %v776
        %1200 = vmax.xlane.f32.xlu0 %v1199
        %v1201 = vpop.xlane.xlu0 %1200
        %v1202 = vsub.f32 %v684, %v1156
        %v1203 = vsub.f32 %v686, %v1156
        %v1204 = vsub.f32 %v690, %v1159
        %v1205 = vsub.f32 %v692, %v1159
        %v1206 = vsub.f32 %v696, %v1162
        %v1207 = vsub.f32 %v698, %v1162
        %v1208 = vsub.f32 %v702, %v1165
        %v1209 = vsub.f32 %v704, %v1165
        %v1210 = vsub.f32 %v708, %v1168
        %v1211 = vsub.f32 %v710, %v1168
        %v1212 = vsub.f32 %v714, %v1171
        %v1213 = vsub.f32 %v716, %v1171
        %v1214 = vsub.f32 %v720, %v1174
        %v1215 = vsub.f32 %v722, %v1174
        %v1216 = vsub.f32 %v726, %v1177
        %v1217 = vsub.f32 %v728, %v1177
        %v1218 = vsub.f32 %v732, %v1180
        %v1219 = vsub.f32 %v734, %v1180
        %v1220 = vsub.f32 %v738, %v1183
        %v1221 = vsub.f32 %v740, %v1183
        %v1222 = vsub.f32 %v744, %v1186
        %v1223 = vsub.f32 %v746, %v1186
        %v1224 = vsub.f32 %v750, %v1189
        %v1225 = vsub.f32 %v752, %v1189
        %v1226 = vsub.f32 %v756, %v1192
        %v1227 = vsub.f32 %v758, %v1192
        %v1228 = vsub.f32 %v762, %v1195
        %v1229 = vsub.f32 %v764, %v1195
        %v1230 = vsub.f32 %v768, %v1198
        %v1231 = vsub.f32 %v770, %v1198
        %v1232 = vsub.f32 %v774, %v1201
        %v1233 = vsub.f32 %v776, %v1201
        %v1234 = vmul.f32 %v1202, 1.442695
        %v1235 = vpow.pop %v1234
        %v1236 = vmul.f32 %v1203, 1.442695
        %v1237 = vpow.pop %v1236
        %v1238 = vmul.f32 %v1204, 1.442695
        %v1239 = vpow.pop %v1238
        %v1240 = vmul.f32 %v1205, 1.442695
        %v1241 = vpow.pop %v1240
        %v1242 = vmul.f32 %v1206, 1.442695
        %v1243 = vpow.pop %v1242
        %v1244 = vmul.f32 %v1207, 1.442695
        %v1245 = vpow.pop %v1244
        %v1246 = vmul.f32 %v1208, 1.442695
        %v1247 = vpow.pop %v1246
        %v1248 = vmul.f32 %v1209, 1.442695
        %v1249 = vpow.pop %v1248
        %v1250 = vmul.f32 %v1210, 1.442695
        %v1251 = vpow.pop %v1250
        %v1252 = vmul.f32 %v1211, 1.442695
        %v1253 = vpow.pop %v1252
        %v1254 = vmul.f32 %v1212, 1.442695
        %v1255 = vpow.pop %v1254
        %v1256 = vmul.f32 %v1213, 1.442695
        %v1257 = vpow.pop %v1256
        %v1258 = vmul.f32 %v1214, 1.442695
        %v1259 = vpow.pop %v1258
        %v1260 = vmul.f32 %v1215, 1.442695
        %v1261 = vpow.pop %v1260
        %v1262 = vmul.f32 %v1216, 1.442695
        %v1263 = vpow.pop %v1262
        %v1264 = vmul.f32 %v1217, 1.442695
        %v1265 = vpow.pop %v1264
        %v1266 = vmul.f32 %v1218, 1.442695
        %v1267 = vpow.pop %v1266
        %v1268 = vmul.f32 %v1219, 1.442695
        %v1269 = vpow.pop %v1268
        %v1270 = vmul.f32 %v1220, 1.442695
        %v1271 = vpow.pop %v1270
        %v1272 = vmul.f32 %v1221, 1.442695
        %v1273 = vpow.pop %v1272
        %v1274 = vmul.f32 %v1222, 1.442695
        %v1275 = vpow.pop %v1274
        %v1276 = vmul.f32 %v1223, 1.442695
        %v1277 = vpow.pop %v1276
        %v1278 = vmul.f32 %v1224, 1.442695
        %v1279 = vpow.pop %v1278
        %v1280 = vmul.f32 %v1225, 1.442695
        %v1281 = vpow.pop %v1280
        %v1282 = vmul.f32 %v1226, 1.442695
        %v1283 = vpow.pop %v1282
        %v1284 = vmul.f32 %v1227, 1.442695
        %v1285 = vpow.pop %v1284
        %v1286 = vmul.f32 %v1228, 1.442695
        %v1287 = vpow.pop %v1286
        %v1288 = vmul.f32 %v1229, 1.442695
        %v1289 = vpow.pop %v1288
        %v1290 = vmul.f32 %v1230, 1.442695
        %v1291 = vpow.pop %v1290
        %v1292 = vmul.f32 %v1231, 1.442695
        %v1293 = vpow.pop %v1292
        %v1294 = vmul.f32 %v1232, 1.442695
        %v1295 = vpow.pop %v1294
        %v1296 = vmul.f32 %v1233, 1.442695
        %v1297 = vpow.pop %v1296
        %v1298 = vadd.f32 %v1235, %v1237
        %1299 = vadd.xlane.f32.xlu0 %v1298
        %v1300 = vpop.xlane.xlu0 %1299
        %v1301 = vadd.f32 %v1239, %v1241
        %1302 = vadd.xlane.f32.xlu0 %v1301
        %v1303 = vpop.xlane.xlu0 %1302
        %v1304 = vadd.f32 %v1243, %v1245
        %1305 = vadd.xlane.f32.xlu0 %v1304
        %v1306 = vpop.xlane.xlu0 %1305
        %v1307 = vadd.f32 %v1247, %v1249
        %1308 = vadd.xlane.f32.xlu0 %v1307
        %v1309 = vpop.xlane.xlu0 %1308
        %v1310 = vadd.f32 %v1251, %v1253
        %1311 = vadd.xlane.f32.xlu0 %v1310
        %v1312 = vpop.xlane.xlu0 %1311
        %v1313 = vadd.f32 %v1255, %v1257
        %1314 = vadd.xlane.f32.xlu0 %v1313
        %v1315 = vpop.xlane.xlu0 %1314
        %v1316 = vadd.f32 %v1259, %v1261
        %1317 = vadd.xlane.f32.xlu0 %v1316
        %v1318 = vpop.xlane.xlu0 %1317
        %v1319 = vadd.f32 %v1263, %v1265
        %1320 = vadd.xlane.f32.xlu0 %v1319
        %v1321 = vpop.xlane.xlu0 %1320
        %v1322 = vadd.f32 %v1267, %v1269
        %1323 = vadd.xlane.f32.xlu0 %v1322
        %v1324 = vpop.xlane.xlu0 %1323
        %v1325 = vadd.f32 %v1271, %v1273
        %1326 = vadd.xlane.f32.xlu0 %v1325
        %v1327 = vpop.xlane.xlu0 %1326
        %v1328 = vadd.f32 %v1275, %v1277
        %1329 = vadd.xlane.f32.xlu0 %v1328
        %v1330 = vpop.xlane.xlu0 %1329
        %v1331 = vadd.f32 %v1279, %v1281
        %1332 = vadd.xlane.f32.xlu0 %v1331
        %v1333 = vpop.xlane.xlu0 %1332
        %v1334 = vadd.f32 %v1283, %v1285
        %1335 = vadd.xlane.f32.xlu0 %v1334
        %v1336 = vpop.xlane.xlu0 %1335
        %v1337 = vadd.f32 %v1287, %v1289
        %1338 = vadd.xlane.f32.xlu0 %v1337
        %v1339 = vpop.xlane.xlu0 %1338
        %v1340 = vadd.f32 %v1291, %v1293
        %1341 = vadd.xlane.f32.xlu0 %v1340
        %v1342 = vpop.xlane.xlu0 %1341
        %v1343 = vadd.f32 %v1295, %v1297
        %1344 = vadd.xlane.f32.xlu0 %v1343
        %v1345 = vpop.xlane.xlu0 %1344
        %v1346 = vrcp.pop %v1300
        %v1347 = vmul.f32 %v1235, %v1346
        %v1348 = vmul.f32 %v1237, %v1346
        %v1349 = vrcp.pop %v1303
        %v1350 = vmul.f32 %v1239, %v1349
        %v1351 = vmul.f32 %v1241, %v1349
        %v1352 = vrcp.pop %v1306
        %v1353 = vmul.f32 %v1243, %v1352
        %v1354 = vmul.f32 %v1245, %v1352
        %v1355 = vrcp.pop %v1309
        %v1356 = vmul.f32 %v1247, %v1355
        %v1357 = vmul.f32 %v1249, %v1355
        %v1358 = vrcp.pop %v1312
        %v1359 = vmul.f32 %v1251, %v1358
        %v1360 = vmul.f32 %v1253, %v1358
        %v1361 = vrcp.pop %v1315
        %v1362 = vmul.f32 %v1255, %v1361
        %v1363 = vmul.f32 %v1257, %v1361
        %v1364 = vrcp.pop %v1318
        %v1365 = vmul.f32 %v1259, %v1364
        %v1366 = vmul.f32 %v1261, %v1364
        %v1367 = vrcp.pop %v1321
        %v1368 = vmul.f32 %v1263, %v1367
        %v1369 = vmul.f32 %v1265, %v1367
        %v1370 = vrcp.pop %v1324
        %v1371 = vmul.f32 %v1267, %v1370
        %v1372 = vmul.f32 %v1269, %v1370
        %v1373 = vrcp.pop %v1327
        %v1374 = vmul.f32 %v1271, %v1373
        %v1375 = vmul.f32 %v1273, %v1373
        %v1376 = vrcp.pop %v1330
        %v1377 = vmul.f32 %v1275, %v1376
        %v1378 = vmul.f32 %v1277, %v1376
        %v1379 = vrcp.pop %v1333
        %v1380 = vmul.f32 %v1279, %v1379
        %v1381 = vmul.f32 %v1281, %v1379
        %v1382 = vrcp.pop %v1336
        %v1383 = vmul.f32 %v1283, %v1382
        %v1384 = vmul.f32 %v1285, %v1382
        %v1385 = vrcp.pop %v1339
        %v1386 = vmul.f32 %v1287, %v1385
        %v1387 = vmul.f32 %v1289, %v1385
        %v1388 = vrcp.pop %v1342
        %v1389 = vmul.f32 %v1291, %v1388
        %v1390 = vmul.f32 %v1293, %v1388
        %v1391 = vrcp.pop %v1345
        %v1392 = vmul.f32 %v1295, %v1391
        %v1393 = vmul.f32 %v1297, %v1391
        %1394 = vmatprep.subr.mxu0 %v782
        %1395 = vmatpush1.xpose.msra.mxu0 %v780
        %1396 = vmatprep.subr.mxu0 %v788
        %1397 = vmatpush1.xpose.msra.mxu0 %v786
        %1398 = vmatprep.subr.mxu0 %v794
        %1399 = vmatpush1.xpose.msra.mxu0 %v792
        %1400 = vmatprep.subr.mxu0 %v800
        %1401 = vmatpush1.xpose.msra.mxu0 %v798
        %1402 = vmatprep.subr.mxu0 0.0
        %1403 = vmatpush1.xpose.msra.mxu0 0.0
        %1404 = vmatprep.subr.mxu0 0.0
        %1405 = vmatpush1.xpose.msra.mxu0 0.0
        %1406 = vmatprep.subr.mxu0 0.0
        %1407 = vmatpush1.xpose.msra.mxu0 0.0
        %1408 = vmatprep.subr.mxu0 0.0
        %1409 = vmatpush1.xpose.msra.mxu0 0.0
        %1410 = vmatprep.subr.mxu0 0.0
        %1411 = vmatpush1.xpose.msra.mxu0 0.0
        %1412 = vmatprep.subr.mxu0 0.0
        %1413 = vmatpush1.xpose.msra.mxu0 0.0
        %1414 = vmatprep.subr.mxu0 0.0
        %1415 = vmatpush1.xpose.msra.mxu0 0.0
        %1416 = vmatprep.subr.mxu0 0.0
        %1417 = vmatpush1.xpose.msra.mxu0 0.0
        %1418 = vmatprep.subr.mxu0 0.0
        %1419 = vmatpush1.xpose.msra.mxu0 0.0
        %1420 = vmatprep.subr.mxu0 0.0
        %1421 = vmatpush1.xpose.msra.mxu0 0.0
        %1422 = vmatprep.subr.mxu0 0.0
        %1423 = vmatpush1.xpose.msra.mxu0 0.0
        %1424 = vmatprep.subr.mxu0 0.0
        %1425 = vmatpush1.xpose.msra.mxu0 0.0
        %1426 = vmatprep.subr.mxu0 0.0
        %1427 = vmatpush1.xpose.msra.mxu0 0.0
        %1428 = vmatprep.subr.mxu0 0.0
        %1429 = vmatpush1.xpose.msra.mxu0 0.0
        %1430 = vmatprep.subr.mxu0 0.0
        %1431 = vmatpush1.xpose.msra.mxu0 0.0
        %1432 = vmatprep.subr.mxu0 0.0
        %1433 = vmatpush1.xpose.msra.mxu0 0.0
        %1434 = vmatprep.subr.mxu0 0.0
        %1435 = vmatpush1.xpose.msra.mxu0 0.0
        %1436 = vmatprep.subr.mxu0 0.0
        %1437 = vmatpush1.xpose.msra.mxu0 0.0
        %1438 = vmatprep.subr.mxu0 0.0
        %1439 = vmatpush1.xpose.msra.mxu0 0.0
        %1440 = vmatprep.subr.mxu0 0.0
        %1441 = vmatpush1.xpose.msra.mxu0 0.0
        %1442 = vmatprep.subr.mxu0 0.0
        %1443 = vmatpush1.xpose.msra.mxu0 0.0
        %1444 = vmatprep.subr.mxu0 0.0
        %1445 = vmatpush1.xpose.msra.mxu0 0.0
        %1446 = vmatprep.subr.mxu0 0.0
        %1447 = vmatpush1.xpose.msra.mxu0 0.0
        %1448 = vmatprep.subr.mxu0 0.0
        %1449 = vmatpush1.xpose.msra.mxu0 0.0
        %1450 = vmatprep.subr.mxu0 0.0
        %1451 = vmatpush1.xpose.msra.mxu0 0.0
        %1452 = vmatprep.subr.mxu0 0.0
        %1453 = vmatpush1.xpose.msra.mxu0 0.0
        %1454 = vmatprep.subr.mxu0 0.0
        %1455 = vmatpush1.xpose.msra.mxu0 0.0
        %1456 = vmatprep.subr.mxu0 0.0
        %1457 = vmatpush1.xpose.msra.mxu0 0.0
        %1458 = vmatprep.mubr.f32.mxu0 %v1348
        %1459 = vmatmul.mubr.f32.gmra.mrb[0].mxu0 %v1347
        %v1460 = vpop.f32.mrb[0].mxu0
        %v1461 = vadd.f32 0.0, %v1460
        %v1462 = vpop.f32.mrb[0].mxu0
        %1463 = vmatprep.mubr.f32.mxu0 %v1351
        %1464 = vmatmul.mubr.f32.gmra.mrb[0].mxu0 %v1350
        %v1465 = vpop.f32.mrb[0].mxu0
        %v1466 = vadd.f32 0.0, %v1465
        %v1467 = vpop.f32.mrb[0].mxu0
        %1468 = vmatprep.mubr.f32.mxu0 %v1354
        %1469 = vmatmul.mubr.f32.gmra.mrb[0].mxu0 %v1353
        %v1470 = vpop.f32.mrb[0].mxu0
        %v1471 = vadd.f32 0.0, %v1470
        %v1472 = vpop.f32.mrb[0].mxu0
        %1473 = vmatprep.mubr.f32.mxu0 %v1357
        %1474 = vmatmul.mubr.f32.gmra.mrb[0].mxu0 %v1356
        %v1475 = vpop.f32.mrb[0].mxu0
        %v1476 = vadd.f32 0.0, %v1475
        %v1477 = vpop.f32.mrb[0].mxu0
        %1478 = vdwg.mxu0
        %1479 = vmatprep.subr.mxu0 %v806
        %1480 = vmatpush1.xpose.msra.mxu0 %v804
        %1481 = vmatprep.subr.mxu0 %v812
        %1482 = vmatpush1.xpose.msra.mxu0 %v810
        %1483 = vmatprep.subr.mxu0 %v818
        %1484 = vmatpush1.xpose.msra.mxu0 %v816
        %1485 = vmatprep.subr.mxu0 %v824
        %1486 = vmatpush1.xpose.msra.mxu0 %v822
        %1487 = vmatprep.subr.mxu0 0.0
        %1488 = vmatpush1.xpose.msra.mxu0 0.0
        %1489 = vmatprep.subr.mxu0 0.0
        %1490 = vmatpush1.xpose.msra.mxu0 0.0
        %1491 = vmatprep.subr.mxu0 0.0
        %1492 = vmatpush1.xpose.msra.mxu0 0.0
        %1493 = vmatprep.subr.mxu0 0.0
        %1494 = vmatpush1.xpose.msra.mxu0 0.0
        %1495 = vmatprep.subr.mxu0 0.0
        %1496 = vmatpush1.xpose.msra.mxu0 0.0
        %1497 = vmatprep.subr.mxu0 0.0
        %1498 = vmatpush1.xpose.msra.mxu0 0.0
        %1499 = vmatprep.subr.mxu0 0.0
        %1500 = vmatpush1.xpose.msra.mxu0 0.0
        %1501 = vmatprep.subr.mxu0 0.0
        %1502 = vmatpush1.xpose.msra.mxu0 0.0
        %1503 = vmatprep.subr.mxu0 0.0
        %1504 = vmatpush1.xpose.msra.mxu0 0.0
        %1505 = vmatprep.subr.mxu0 0.0
        %1506 = vmatpush1.xpose.msra.mxu0 0.0
        %1507 = vmatprep.subr.mxu0 0.0
        %1508 = vmatpush1.xpose.msra.mxu0 0.0
        %1509 = vmatprep.subr.mxu0 0.0
        %1510 = vmatpush1.xpose.msra.mxu0 0.0
        %1511 = vmatprep.subr.mxu0 0.0
        %1512 = vmatpush1.xpose.msra.mxu0 0.0
        %1513 = vmatprep.subr.mxu0 0.0
        %1514 = vmatpush1.xpose.msra.mxu0 0.0
        %1515 = vmatprep.subr.mxu0 0.0
        %1516 = vmatpush1.xpose.msra.mxu0 0.0
        %1517 = vmatprep.subr.mxu0 0.0
        %1518 = vmatpush1.xpose.msra.mxu0 0.0
        %1519 = vmatprep.subr.mxu0 0.0
        %1520 = vmatpush1.xpose.msra.mxu0 0.0
        %1521 = vmatprep.subr.mxu0 0.0
        %1522 = vmatpush1.xpose.msra.mxu0 0.0
        %1523 = vmatprep.subr.mxu0 0.0
        %1524 = vmatpush1.xpose.msra.mxu0 0.0
        %1525 = vmatprep.subr.mxu0 0.0
        %1526 = vmatpush1.xpose.msra.mxu0 0.0
        %1527 = vmatprep.subr.mxu0 0.0
        %1528 = vmatpush1.xpose.msra.mxu0 0.0
        %1529 = vmatprep.subr.mxu0 0.0
        %1530 = vmatpush1.xpose.msra.mxu0 0.0
        %1531 = vmatprep.subr.mxu0 0.0
        %1532 = vmatpush1.xpose.msra.mxu0 0.0
        %1533 = vmatprep.subr.mxu0 0.0
        %1534 = vmatpush1.xpose.msra.mxu0 0.0
        %1535 = vmatprep.subr.mxu0 0.0
        %1536 = vmatpush1.xpose.msra.mxu0 0.0
        %1537 = vmatprep.subr.mxu0 0.0
        %1538 = vmatpush1.xpose.msra.mxu0 0.0
        %1539 = vmatprep.subr.mxu0 0.0
        %1540 = vmatpush1.xpose.msra.mxu0 0.0
        %1541 = vmatprep.subr.mxu0 0.0
        %1542 = vmatpush1.xpose.msra.mxu0 0.0
        %1543 = vmatprep.mubr.f32.mxu0 %v1360
        %1544 = vmatmul.mubr.f32.gmra.mrb[0].mxu0 %v1359
        %v1545 = vpop.f32.mrb[0].mxu0
        %v1546 = vadd.f32 0.0, %v1545
        %v1547 = vpop.f32.mrb[0].mxu0
        %1548 = vmatprep.mubr.f32.mxu0 %v1363
        %1549 = vmatmul.mubr.f32.gmra.mrb[0].mxu0 %v1362
        %v1550 = vpop.f32.mrb[0].mxu0
        %v1551 = vadd.f32 0.0, %v1550
        %v1552 = vpop.f32.mrb[0].mxu0
        %1553 = vmatprep.mubr.f32.mxu0 %v1366
        %1554 = vmatmul.mubr.f32.gmra.mrb[0].mxu0 %v1365
        %v1555 = vpop.f32.mrb[0].mxu0
        %v1556 = vadd.f32 0.0, %v1555
        %v1557 = vpop.f32.mrb[0].mxu0
        %1558 = vmatprep.mubr.f32.mxu0 %v1369
        %1559 = vmatmul.mubr.f32.gmra.mrb[0].mxu0 %v1368
        %v1560 = vpop.f32.mrb[0].mxu0
        %v1561 = vadd.f32 0.0, %v1560
        %v1562 = vpop.f32.mrb[0].mxu0
        %1563 = vdwg.mxu0
        %1564 = vmatprep.subr.mxu0 %v830
        %1565 = vmatpush1.xpose.msra.mxu0 %v828
        %1566 = vmatprep.subr.mxu0 %v836
        %1567 = vmatpush1.xpose.msra.mxu0 %v834
        %1568 = vmatprep.subr.mxu0 %v842
        %1569 = vmatpush1.xpose.msra.mxu0 %v840
        %1570 = vmatprep.subr.mxu0 %v848
        %1571 = vmatpush1.xpose.msra.mxu0 %v846
        %1572 = vmatprep.subr.mxu0 0.0
        %1573 = vmatpush1.xpose.msra.mxu0 0.0
        %1574 = vmatprep.subr.mxu0 0.0
        %1575 = vmatpush1.xpose.msra.mxu0 0.0
        %1576 = vmatprep.subr.mxu0 0.0
        %1577 = vmatpush1.xpose.msra.mxu0 0.0
        %1578 = vmatprep.subr.mxu0 0.0
        %1579 = vmatpush1.xpose.msra.mxu0 0.0
        %1580 = vmatprep.subr.mxu0 0.0
        %1581 = vmatpush1.xpose.msra.mxu0 0.0
        %1582 = vmatprep.subr.mxu0 0.0
        %1583 = vmatpush1.xpose.msra.mxu0 0.0
        %1584 = vmatprep.subr.mxu0 0.0
        %1585 = vmatpush1.xpose.msra.mxu0 0.0
        %1586 = vmatprep.subr.mxu0 0.0
        %1587 = vmatpush1.xpose.msra.mxu0 0.0
        %1588 = vmatprep.subr.mxu0 0.0
        %1589 = vmatpush1.xpose.msra.mxu0 0.0
        %1590 = vmatprep.subr.mxu0 0.0
        %1591 = vmatpush1.xpose.msra.mxu0 0.0
        %1592 = vmatprep.subr.mxu0 0.0
        %1593 = vmatpush1.xpose.msra.mxu0 0.0
        %1594 = vmatprep.subr.mxu0 0.0
        %1595 = vmatpush1.xpose.msra.mxu0 0.0
        %1596 = vmatprep.subr.mxu0 0.0
        %1597 = vmatpush1.xpose.msra.mxu0 0.0
        %1598 = vmatprep.subr.mxu0 0.0
        %1599 = vmatpush1.xpose.msra.mxu0 0.0
        %1600 = vmatprep.subr.mxu0 0.0
        %1601 = vmatpush1.xpose.msra.mxu0 0.0
        %1602 = vmatprep.subr.mxu0 0.0
        %1603 = vmatpush1.xpose.msra.mxu0 0.0
        %1604 = vmatprep.subr.mxu0 0.0
        %1605 = vmatpush1.xpose.msra.mxu0 0.0
        %1606 = vmatprep.subr.mxu0 0.0
        %1607 = vmatpush1.xpose.msra.mxu0 0.0
        %1608 = vmatprep.subr.mxu0 0.0
        %1609 = vmatpush1.xpose.msra.mxu0 0.0
        %1610 = vmatprep.subr.mxu0 0.0
        %1611 = vmatpush1.xpose.msra.mxu0 0.0
        %1612 = vmatprep.subr.mxu0 0.0
        %1613 = vmatpush1.xpose.msra.mxu0 0.0
        %1614 = vmatprep.subr.mxu0 0.0
        %1615 = vmatpush1.xpose.msra.mxu0 0.0
        %1616 = vmatprep.subr.mxu0 0.0
        %1617 = vmatpush1.xpose.msra.mxu0 0.0
        %1618 = vmatprep.subr.mxu0 0.0
        %1619 = vmatpush1.xpose.msra.mxu0 0.0
        %1620 = vmatprep.subr.mxu0 0.0
        %1621 = vmatpush1.xpose.msra.mxu0 0.0
        %1622 = vmatprep.subr.mxu0 0.0
        %1623 = vmatpush1.xpose.msra.mxu0 0.0
        %1624 = vmatprep.subr.mxu0 0.0
        %1625 = vmatpush1.xpose.msra.mxu0 0.0
        %1626 = vmatprep.subr.mxu0 0.0
        %1627 = vmatpush1.xpose.msra.mxu0 0.0
        %1628 = vmatprep.mubr.f32.mxu0 %v1372
        %1629 = vmatmul.mubr.f32.gmra.mrb[0].mxu0 %v1371
        %v1630 = vpop.f32.mrb[0].mxu0
        %v1631 = vadd.f32 0.0, %v1630
        %v1632 = vpop.f32.mrb[0].mxu0
        %1633 = vmatprep.mubr.f32.mxu0 %v1375
        %1634 = vmatmul.mubr.f32.gmra.mrb[0].mxu0 %v1374
        %v1635 = vpop.f32.mrb[0].mxu0
        %v1636 = vadd.f32 0.0, %v1635
        %v1637 = vpop.f32.mrb[0].mxu0
        %1638 = vmatprep.mubr.f32.mxu0 %v1378
        %1639 = vmatmul.mubr.f32.gmra.mrb[0].mxu0 %v1377
        %v1640 = vpop.f32.mrb[0].mxu0
        %v1641 = vadd.f32 0.0, %v1640
        %v1642 = vpop.f32.mrb[0].mxu0
        %1643 = vmatprep.mubr.f32.mxu0 %v1381
        %1644 = vmatmul.mubr.f32.gmra.mrb[0].mxu0 %v1380
        %v1645 = vpop.f32.mrb[0].mxu0
        %v1646 = vadd.f32 0.0, %v1645
        %v1647 = vpop.f32.mrb[0].mxu0
        %1648 = vdwg.mxu0
        %1649 = vmatprep.subr.mxu0 %v854
        %1650 = vmatpush1.xpose.msra.mxu0 %v852
        %1651 = vmatprep.subr.mxu0 %v860
        %1652 = vmatpush1.xpose.msra.mxu0 %v858
        %1653 = vmatprep.subr.mxu0 %v866
        %1654 = vmatpush1.xpose.msra.mxu0 %v864
        %1655 = vmatprep.subr.mxu0 %v872
        %1656 = vmatpush1.xpose.msra.mxu0 %v870
        %1657 = vmatprep.subr.mxu0 0.0
        %1658 = vmatpush1.xpose.msra.mxu0 0.0
        %1659 = vmatprep.subr.mxu0 0.0
        %1660 = vmatpush1.xpose.msra.mxu0 0.0
        %1661 = vmatprep.subr.mxu0 0.0
        %1662 = vmatpush1.xpose.msra.mxu0 0.0
        %1663 = vmatprep.subr.mxu0 0.0
        %1664 = vmatpush1.xpose.msra.mxu0 0.0
        %1665 = vmatprep.subr.mxu0 0.0
        %1666 = vmatpush1.xpose.msra.mxu0 0.0
        %1667 = vmatprep.subr.mxu0 0.0
        %1668 = vmatpush1.xpose.msra.mxu0 0.0
        %1669 = vmatprep.subr.mxu0 0.0
        %1670 = vmatpush1.xpose.msra.mxu0 0.0
        %1671 = vmatprep.subr.mxu0 0.0
        %1672 = vmatpush1.xpose.msra.mxu0 0.0
        %1673 = vmatprep.subr.mxu0 0.0
        %1674 = vmatpush1.xpose.msra.mxu0 0.0
        %1675 = vmatprep.subr.mxu0 0.0
        %1676 = vmatpush1.xpose.msra.mxu0 0.0
        %1677 = vmatprep.subr.mxu0 0.0
        %1678 = vmatpush1.xpose.msra.mxu0 0.0
        %1679 = vmatprep.subr.mxu0 0.0
        %1680 = vmatpush1.xpose.msra.mxu0 0.0
        %1681 = vmatprep.subr.mxu0 0.0
        %1682 = vmatpush1.xpose.msra.mxu0 0.0
        %1683 = vmatprep.subr.mxu0 0.0
        %1684 = vmatpush1.xpose.msra.mxu0 0.0
        %1685 = vmatprep.subr.mxu0 0.0
        %1686 = vmatpush1.xpose.msra.mxu0 0.0
        %1687 = vmatprep.subr.mxu0 0.0
        %1688 = vmatpush1.xpose.msra.mxu0 0.0
        %1689 = vmatprep.subr.mxu0 0.0
        %1690 = vmatpush1.xpose.msra.mxu0 0.0
        %1691 = vmatprep.subr.mxu0 0.0
        %1692 = vmatpush1.xpose.msra.mxu0 0.0
        %1693 = vmatprep.subr.mxu0 0.0
        %1694 = vmatpush1.xpose.msra.mxu0 0.0
        %1695 = vmatprep.subr.mxu0 0.0
        %1696 = vmatpush1.xpose.msra.mxu0 0.0
        %1697 = vmatprep.subr.mxu0 0.0
        %1698 = vmatpush1.xpose.msra.mxu0 0.0
        %1699 = vmatprep.subr.mxu0 0.0
        %1700 = vmatpush1.xpose.msra.mxu0 0.0
        %1701 = vmatprep.subr.mxu0 0.0
        %1702 = vmatpush1.xpose.msra.mxu0 0.0
        %1703 = vmatprep.subr.mxu0 0.0
        %1704 = vmatpush1.xpose.msra.mxu0 0.0
        %1705 = vmatprep.subr.mxu0 0.0
        %1706 = vmatpush1.xpose.msra.mxu0 0.0
        %1707 = vmatprep.subr.mxu0 0.0
        %1708 = vmatpush1.xpose.msra.mxu0 0.0
        %1709 = vmatprep.subr.mxu0 0.0
        %1710 = vmatpush1.xpose.msra.mxu0 0.0
        %1711 = vmatprep.subr.mxu0 0.0
        %1712 = vmatpush1.xpose.msra.mxu0 0.0
        %1713 = vmatprep.mubr.f32.mxu0 %v1384
        %1714 = vmatmul.mubr.f32.gmra.mrb[0].mxu0 %v1383
        %v1715 = vpop.f32.mrb[0].mxu0
        %v1716 = vadd.f32 0.0, %v1715
        %v1717 = vpop.f32.mrb[0].mxu0
        %1718 = vmatprep.mubr.f32.mxu0 %v1387
        %1719 = vmatmul.mubr.f32.gmra.mrb[0].mxu0 %v1386
        %v1720 = vpop.f32.mrb[0].mxu0
        %v1721 = vadd.f32 0.0, %v1720
        %v1722 = vpop.f32.mrb[0].mxu0
        %1723 = vmatprep.mubr.f32.mxu0 %v1390
        %1724 = vmatmul.mubr.f32.gmra.mrb[0].mxu0 %v1389
        %v1725 = vpop.f32.mrb[0].mxu0
        %v1726 = vadd.f32 0.0, %v1725
        %v1727 = vpop.f32.mrb[0].mxu0
        %1728 = vmatprep.mubr.f32.mxu0 %v1393
        %1729 = vmatmul.mubr.f32.gmra.mrb[0].mxu0 %v1392
        %v1730 = vpop.f32.mrb[0].mxu0
        %v1731 = vadd.f32 0.0, %v1730
        %v1732 = vpop.f32.mrb[0].mxu0
        %1733 = vdwg.mxu0
        %1734 = vxpose.xlu0.b32.start [1/16] %v1461, 128
        %1735 = vxpose.xlu0.b32.cont [2/16] %v1466, 128
        %1736 = vxpose.xlu0.b32.cont [3/16] %v1471, 128
        %1737 = vxpose.xlu0.b32.cont [4/16] %v1476, 128
        %1738 = vxpose.xlu0.b32.cont [5/16] 0.0, 128
        %1739 = vxpose.xlu0.b32.cont [6/16] 0.0, 128
        %1740 = vxpose.xlu0.b32.cont [7/16] 0.0, 128
        %1741 = vxpose.xlu0.b32.cont [8/16] 0.0, 128
        %1742 = vxpose.xlu0.b32.cont [9/16] 0.0, 128
        %1743 = vxpose.xlu0.b32.cont [10/16] 0.0, 128
        %1744 = vxpose.xlu0.b32.cont [11/16] 0.0, 128
        %1745 = vxpose.xlu0.b32.cont [12/16] 0.0, 128
        %1746 = vxpose.xlu0.b32.cont [13/16] 0.0, 128
        %1747 = vxpose.xlu0.b32.cont [14/16] 0.0, 128
        %1748 = vxpose.xlu0.b32.cont [15/16] 0.0, 128
        %1749 = vxpose.xlu0.b32.end [16/16] 0.0, 128
        %v1750 = vpop.trf.xlu0
        %v1751 = vpop.trf.xlu0
        %v1752 = vpop.trf.xlu0
        %v1753 = vpop.trf.xlu0
        %v1754 = vpop.trf.xlu0
        %v1755 = vpop.trf.xlu0
        %v1756 = vpop.trf.xlu0
        %v1757 = vpop.trf.xlu0
        %v1758 = vpop.trf.xlu0
        %v1759 = vpop.trf.xlu0
        %v1760 = vpop.trf.xlu0
        %v1761 = vpop.trf.xlu0
        %v1762 = vpop.trf.xlu0
        %v1763 = vpop.trf.xlu0
        %v1764 = vpop.trf.xlu0
        %v1765 = vpop.trf.xlu0
        %v1767 = vsel %vm376, %v1750, 0
        %v1770 = vsel %vm376, %v1751, 0
        %v1773 = vsel %vm376, %v1752, 0
        %v1776 = vsel %vm376, %v1753, 0
        %1778 = vmatprep.subr.mxu0 %v1117
        %1779 = vmatpush1.msra.mxu0 %v1115
        %1780 = vmatprep.subr.mxu0 %v1119
        %1781 = vmatpush1.msra.mxu0 %v1118
        %1782 = vmatprep.subr.mxu0 %v1121
        %1783 = vmatpush1.msra.mxu0 %v1120
        %1784 = vmatprep.subr.mxu0 %v1123
        %1785 = vmatpush1.msra.mxu0 %v1122
        %1786 = vmatprep.subr.mxu0 0.0
        %1787 = vmatpush1.msra.mxu0 0.0
        %1788 = vmatprep.subr.mxu0 0.0
        %1789 = vmatpush1.msra.mxu0 0.0
        %1790 = vmatprep.subr.mxu0 0.0
        %1791 = vmatpush1.msra.mxu0 0.0
        %1792 = vmatprep.subr.mxu0 0.0
        %1793 = vmatpush1.msra.mxu0 0.0
        %1794 = vmatprep.subr.mxu0 0.0
        %1795 = vmatpush1.msra.mxu0 0.0
        %1796 = vmatprep.subr.mxu0 0.0
        %1797 = vmatpush1.msra.mxu0 0.0
        %1798 = vmatprep.subr.mxu0 0.0
        %1799 = vmatpush1.msra.mxu0 0.0
        %1800 = vmatprep.subr.mxu0 0.0
        %1801 = vmatpush1.msra.mxu0 0.0
        %1802 = vmatprep.subr.mxu0 0.0
        %1803 = vmatpush1.msra.mxu0 0.0
        %1804 = vmatprep.subr.mxu0 0.0
        %1805 = vmatpush1.msra.mxu0 0.0
        %1806 = vmatprep.subr.mxu0 0.0
        %1807 = vmatpush1.msra.mxu0 0.0
        %1808 = vmatprep.subr.mxu0 0.0
        %1809 = vmatpush1.msra.mxu0 0.0
        %1810 = vmatprep.subr.mxu0 0.0
        %1811 = vmatpush1.msra.mxu0 0.0
        %1812 = vmatprep.subr.mxu0 0.0
        %1813 = vmatpush1.msra.mxu0 0.0
        %1814 = vmatprep.subr.mxu0 0.0
        %1815 = vmatpush1.msra.mxu0 0.0
        %1816 = vmatprep.subr.mxu0 0.0
        %1817 = vmatpush1.msra.mxu0 0.0
        %1818 = vmatprep.subr.mxu0 0.0
        %1819 = vmatpush1.msra.mxu0 0.0
        %1820 = vmatprep.subr.mxu0 0.0
        %1821 = vmatpush1.msra.mxu0 0.0
        %1822 = vmatprep.subr.mxu0 0.0
        %1823 = vmatpush1.msra.mxu0 0.0
        %1824 = vmatprep.subr.mxu0 0.0
        %1825 = vmatpush1.msra.mxu0 0.0
        %1826 = vmatprep.subr.mxu0 0.0
        %1827 = vmatpush1.msra.mxu0 0.0
        %1828 = vmatprep.subr.mxu0 0.0
        %1829 = vmatpush1.msra.mxu0 0.0
        %1830 = vmatprep.subr.mxu0 0.0
        %1831 = vmatpush1.msra.mxu0 0.0
        %1832 = vmatprep.subr.mxu0 0.0
        %1833 = vmatpush1.msra.mxu0 0.0
        %1834 = vmatprep.subr.mxu0 0.0
        %1835 = vmatpush1.msra.mxu0 0.0
        %1836 = vmatprep.subr.mxu0 0.0
        %1837 = vmatpush1.msra.mxu0 0.0
        %1838 = vmatprep.subr.mxu0 0.0
        %1839 = vmatpush1.msra.mxu0 0.0
        %1840 = vmatprep.subr.mxu0 0.0
        %1841 = vmatpush1.msra.mxu0 0.0
        %1842 = vmatprep.mubr.f32.mxu0 0.0
        %1843 = vmatmul.mubr.f32.gmra.mrb[0].mxu0 %v1767
        %v1844 = vpop.f32.mrb[0].mxu0
        %v1845 = vadd.f32 0.0, %v1844
        %v1846 = vpop.f32.mrb[0].mxu0
        %v1847 = vadd.f32 0.0, %v1846
        %1848 = vmatprep.mubr.f32.mxu0 0.0
        %1849 = vmatmul.mubr.f32.gmra.mrb[0].mxu0 %v1770
        %v1850 = vpop.f32.mrb[0].mxu0
        %v1851 = vadd.f32 0.0, %v1850
        %v1852 = vpop.f32.mrb[0].mxu0
        %v1853 = vadd.f32 0.0, %v1852
        %1854 = vmatprep.mubr.f32.mxu0 0.0
        %1855 = vmatmul.mubr.f32.gmra.mrb[0].mxu0 %v1773
        %v1856 = vpop.f32.mrb[0].mxu0
        %v1857 = vadd.f32 0.0, %v1856
        %v1858 = vpop.f32.mrb[0].mxu0
        %v1859 = vadd.f32 0.0, %v1858
        %1860 = vmatprep.mubr.f32.mxu0 0.0
        %1861 = vmatmul.mubr.f32.gmra.mrb[0].mxu0 %v1776
        %v1862 = vpop.f32.mrb[0].mxu0
        %v1863 = vadd.f32 0.0, %v1862
        %v1864 = vpop.f32.mrb[0].mxu0
        %v1865 = vadd.f32 0.0, %v1864
        %1866 = vdwg.mxu0
        %1867 = vxpose.xlu0.b32.start [1/16] %v1546, 128
        %1868 = vxpose.xlu0.b32.cont [2/16] %v1551, 128
        %1869 = vxpose.xlu0.b32.cont [3/16] %v1556, 128
        %1870 = vxpose.xlu0.b32.cont [4/16] %v1561, 128
        %1871 = vxpose.xlu0.b32.cont [5/16] 0.0, 128
        %1872 = vxpose.xlu0.b32.cont [6/16] 0.0, 128
        %1873 = vxpose.xlu0.b32.cont [7/16] 0.0, 128
        %1874 = vxpose.xlu0.b32.cont [8/16] 0.0, 128
        %1875 = vxpose.xlu0.b32.cont [9/16] 0.0, 128
        %1876 = vxpose.xlu0.b32.cont [10/16] 0.0, 128
        %1877 = vxpose.xlu0.b32.cont [11/16] 0.0, 128
        %1878 = vxpose.xlu0.b32.cont [12/16] 0.0, 128
        %1879 = vxpose.xlu0.b32.cont [13/16] 0.0, 128
        %1880 = vxpose.xlu0.b32.cont [14/16] 0.0, 128
        %1881 = vxpose.xlu0.b32.cont [15/16] 0.0, 128
        %1882 = vxpose.xlu0.b32.end [16/16] 0.0, 128
        %v1883 = vpop.trf.xlu0
        %v1884 = vpop.trf.xlu0
        %v1885 = vpop.trf.xlu0
        %v1886 = vpop.trf.xlu0
        %v1887 = vpop.trf.xlu0
        %v1888 = vpop.trf.xlu0
        %v1889 = vpop.trf.xlu0
        %v1890 = vpop.trf.xlu0
        %v1891 = vpop.trf.xlu0
        %v1892 = vpop.trf.xlu0
        %v1893 = vpop.trf.xlu0
        %v1894 = vpop.trf.xlu0
        %v1895 = vpop.trf.xlu0
        %v1896 = vpop.trf.xlu0
        %v1897 = vpop.trf.xlu0
        %v1898 = vpop.trf.xlu0
        %v1900 = vsel %vm376, %v1883, 0
        %v1903 = vsel %vm376, %v1884, 0
        %v1906 = vsel %vm376, %v1885, 0
        %v1909 = vsel %vm376, %v1886, 0
        %1911 = vmatprep.subr.mxu0 %v1127
        %1912 = vmatpush1.msra.mxu0 %v1125
        %1913 = vmatprep.subr.mxu0 %v1129
        %1914 = vmatpush1.msra.mxu0 %v1128
        %1915 = vmatprep.subr.mxu0 %v1131
        %1916 = vmatpush1.msra.mxu0 %v1130
        %1917 = vmatprep.subr.mxu0 %v1133
        %1918 = vmatpush1.msra.mxu0 %v1132
        %1919 = vmatprep.subr.mxu0 0.0
        %1920 = vmatpush1.msra.mxu0 0.0
        %1921 = vmatprep.subr.mxu0 0.0
        %1922 = vmatpush1.msra.mxu0 0.0
        %1923 = vmatprep.subr.mxu0 0.0
        %1924 = vmatpush1.msra.mxu0 0.0
        %1925 = vmatprep.subr.mxu0 0.0
        %1926 = vmatpush1.msra.mxu0 0.0
        %1927 = vmatprep.subr.mxu0 0.0
        %1928 = vmatpush1.msra.mxu0 0.0
        %1929 = vmatprep.subr.mxu0 0.0
        %1930 = vmatpush1.msra.mxu0 0.0
        %1931 = vmatprep.subr.mxu0 0.0
        %1932 = vmatpush1.msra.mxu0 0.0
        %1933 = vmatprep.subr.mxu0 0.0
        %1934 = vmatpush1.msra.mxu0 0.0
        %1935 = vmatprep.subr.mxu0 0.0
        %1936 = vmatpush1.msra.mxu0 0.0
        %1937 = vmatprep.subr.mxu0 0.0
        %1938 = vmatpush1.msra.mxu0 0.0
        %1939 = vmatprep.subr.mxu0 0.0
        %1940 = vmatpush1.msra.mxu0 0.0
        %1941 = vmatprep.subr.mxu0 0.0
        %1942 = vmatpush1.msra.mxu0 0.0
        %1943 = vmatprep.subr.mxu0 0.0
        %1944 = vmatpush1.msra.mxu0 0.0
        %1945 = vmatprep.subr.mxu0 0.0
        %1946 = vmatpush1.msra.mxu0 0.0
        %1947 = vmatprep.subr.mxu0 0.0
        %1948 = vmatpush1.msra.mxu0 0.0
        %1949 = vmatprep.subr.mxu0 0.0
        %1950 = vmatpush1.msra.mxu0 0.0
        %1951 = vmatprep.subr.mxu0 0.0
        %1952 = vmatpush1.msra.mxu0 0.0
        %1953 = vmatprep.subr.mxu0 0.0
        %1954 = vmatpush1.msra.mxu0 0.0
        %1955 = vmatprep.subr.mxu0 0.0
        %1956 = vmatpush1.msra.mxu0 0.0
        %1957 = vmatprep.subr.mxu0 0.0
        %1958 = vmatpush1.msra.mxu0 0.0
        %1959 = vmatprep.subr.mxu0 0.0
        %1960 = vmatpush1.msra.mxu0 0.0
        %1961 = vmatprep.subr.mxu0 0.0
        %1962 = vmatpush1.msra.mxu0 0.0
        %1963 = vmatprep.subr.mxu0 0.0
        %1964 = vmatpush1.msra.mxu0 0.0
        %1965 = vmatprep.subr.mxu0 0.0
        %1966 = vmatpush1.msra.mxu0 0.0
        %1967 = vmatprep.subr.mxu0 0.0
        %1968 = vmatpush1.msra.mxu0 0.0
        %1969 = vmatprep.subr.mxu0 0.0
        %1970 = vmatpush1.msra.mxu0 0.0
        %1971 = vmatprep.subr.mxu0 0.0
        %1972 = vmatpush1.msra.mxu0 0.0
        %1973 = vmatprep.subr.mxu0 0.0
        %1974 = vmatpush1.msra.mxu0 0.0
        %1975 = vmatprep.mubr.f32.mxu0 0.0
        %1976 = vmatmul.mubr.f32.gmra.mrb[0].mxu0 %v1900
        %v1977 = vpop.f32.mrb[0].mxu0
        %v1978 = vadd.f32 0.0, %v1977
        %v1979 = vpop.f32.mrb[0].mxu0
        %v1980 = vadd.f32 0.0, %v1979
        %1981 = vmatprep.mubr.f32.mxu0 0.0
        %1982 = vmatmul.mubr.f32.gmra.mrb[0].mxu0 %v1903
        %v1983 = vpop.f32.mrb[0].mxu0
        %v1984 = vadd.f32 0.0, %v1983
        %v1985 = vpop.f32.mrb[0].mxu0
        %v1986 = vadd.f32 0.0, %v1985
        %1987 = vmatprep.mubr.f32.mxu0 0.0
        %1988 = vmatmul.mubr.f32.gmra.mrb[0].mxu0 %v1906
        %v1989 = vpop.f32.mrb[0].mxu0
        %v1990 = vadd.f32 0.0, %v1989
        %v1991 = vpop.f32.mrb[0].mxu0
        %v1992 = vadd.f32 0.0, %v1991
        %1993 = vmatprep.mubr.f32.mxu0 0.0
        %1994 = vmatmul.mubr.f32.gmra.mrb[0].mxu0 %v1909
        %v1995 = vpop.f32.mrb[0].mxu0
        %v1996 = vadd.f32 0.0, %v1995
        %v1997 = vpop.f32.mrb[0].mxu0
        %v1998 = vadd.f32 0.0, %v1997
        %1999 = vdwg.mxu0
        %2000 = vxpose.xlu0.b32.start [1/16] %v1631, 128
        %2001 = vxpose.xlu0.b32.cont [2/16] %v1636, 128
        %2002 = vxpose.xlu0.b32.cont [3/16] %v1641, 128
        %2003 = vxpose.xlu0.b32.cont [4/16] %v1646, 128
        %2004 = vxpose.xlu0.b32.cont [5/16] 0.0, 128
        %2005 = vxpose.xlu0.b32.cont [6/16] 0.0, 128
        %2006 = vxpose.xlu0.b32.cont [7/16] 0.0, 128
        %2007 = vxpose.xlu0.b32.cont [8/16] 0.0, 128
        %2008 = vxpose.xlu0.b32.cont [9/16] 0.0, 128
        %2009 = vxpose.xlu0.b32.cont [10/16] 0.0, 128
        %2010 = vxpose.xlu0.b32.cont [11/16] 0.0, 128
        %2011 = vxpose.xlu0.b32.cont [12/16] 0.0, 128
        %2012 = vxpose.xlu0.b32.cont [13/16] 0.0, 128
        %2013 = vxpose.xlu0.b32.cont [14/16] 0.0, 128
        %2014 = vxpose.xlu0.b32.cont [15/16] 0.0, 128
        %2015 = vxpose.xlu0.b32.end [16/16] 0.0, 128
        %v2016 = vpop.trf.xlu0
        %v2017 = vpop.trf.xlu0
        %v2018 = vpop.trf.xlu0
        %v2019 = vpop.trf.xlu0
        %v2020 = vpop.trf.xlu0
        %v2021 = vpop.trf.xlu0
        %v2022 = vpop.trf.xlu0
        %v2023 = vpop.trf.xlu0
        %v2024 = vpop.trf.xlu0
        %v2025 = vpop.trf.xlu0
        %v2026 = vpop.trf.xlu0
        %v2027 = vpop.trf.xlu0
        %v2028 = vpop.trf.xlu0
        %v2029 = vpop.trf.xlu0
        %v2030 = vpop.trf.xlu0
        %v2031 = vpop.trf.xlu0
        %v2033 = vsel %vm376, %v2016, 0
        %v2036 = vsel %vm376, %v2017, 0
        %v2039 = vsel %vm376, %v2018, 0
        %v2042 = vsel %vm376, %v2019, 0
        %2044 = vmatprep.subr.mxu0 %v1137
        %2045 = vmatpush1.msra.mxu0 %v1135
        %2046 = vmatprep.subr.mxu0 %v1139
        %2047 = vmatpush1.msra.mxu0 %v1138
        %2048 = vmatprep.subr.mxu0 %v1141
        %2049 = vmatpush1.msra.mxu0 %v1140
        %2050 = vmatprep.subr.mxu0 %v1143
        %2051 = vmatpush1.msra.mxu0 %v1142
        %2052 = vmatprep.subr.mxu0 0.0
        %2053 = vmatpush1.msra.mxu0 0.0
        %2054 = vmatprep.subr.mxu0 0.0
        %2055 = vmatpush1.msra.mxu0 0.0
        %2056 = vmatprep.subr.mxu0 0.0
        %2057 = vmatpush1.msra.mxu0 0.0
        %2058 = vmatprep.subr.mxu0 0.0
        %2059 = vmatpush1.msra.mxu0 0.0
        %2060 = vmatprep.subr.mxu0 0.0
        %2061 = vmatpush1.msra.mxu0 0.0
        %2062 = vmatprep.subr.mxu0 0.0
        %2063 = vmatpush1.msra.mxu0 0.0
        %2064 = vmatprep.subr.mxu0 0.0
        %2065 = vmatpush1.msra.mxu0 0.0
        %2066 = vmatprep.subr.mxu0 0.0
        %2067 = vmatpush1.msra.mxu0 0.0
        %2068 = vmatprep.subr.mxu0 0.0
        %2069 = vmatpush1.msra.mxu0 0.0
        %2070 = vmatprep.subr.mxu0 0.0
        %2071 = vmatpush1.msra.mxu0 0.0
        %2072 = vmatprep.subr.mxu0 0.0
        %2073 = vmatpush1.msra.mxu0 0.0
        %2074 = vmatprep.subr.mxu0 0.0
        %2075 = vmatpush1.msra.mxu0 0.0
        %2076 = vmatprep.subr.mxu0 0.0
        %2077 = vmatpush1.msra.mxu0 0.0
        %2078 = vmatprep.subr.mxu0 0.0
        %2079 = vmatpush1.msra.mxu0 0.0
        %2080 = vmatprep.subr.mxu0 0.0
        %2081 = vmatpush1.msra.mxu0 0.0
        %2082 = vmatprep.subr.mxu0 0.0
        %2083 = vmatpush1.msra.mxu0 0.0
        %2084 = vmatprep.subr.mxu0 0.0
        %2085 = vmatpush1.msra.mxu0 0.0
        %2086 = vmatprep.subr.mxu0 0.0
        %2087 = vmatpush1.msra.mxu0 0.0
        %2088 = vmatprep.subr.mxu0 0.0
        %2089 = vmatpush1.msra.mxu0 0.0
        %2090 = vmatprep.subr.mxu0 0.0
        %2091 = vmatpush1.msra.mxu0 0.0
        %2092 = vmatprep.subr.mxu0 0.0
        %2093 = vmatpush1.msra.mxu0 0.0
        %2094 = vmatprep.subr.mxu0 0.0
        %2095 = vmatpush1.msra.mxu0 0.0
        %2096 = vmatprep.subr.mxu0 0.0
        %2097 = vmatpush1.msra.mxu0 0.0
        %2098 = vmatprep.subr.mxu0 0.0
        %2099 = vmatpush1.msra.mxu0 0.0
        %2100 = vmatprep.subr.mxu0 0.0
        %2101 = vmatpush1.msra.mxu0 0.0
        %2102 = vmatprep.subr.mxu0 0.0
        %2103 = vmatpush1.msra.mxu0 0.0
        %2104 = vmatprep.subr.mxu0 0.0
        %2105 = vmatpush1.msra.mxu0 0.0
        %2106 = vmatprep.subr.mxu0 0.0
        %2107 = vmatpush1.msra.mxu0 0.0
        %2108 = vmatprep.mubr.f32.mxu0 0.0
        %2109 = vmatmul.mubr.f32.gmra.mrb[0].mxu0 %v2033
        %v2110 = vpop.f32.mrb[0].mxu0
        %v2111 = vadd.f32 0.0, %v2110
        %v2112 = vpop.f32.mrb[0].mxu0
        %v2113 = vadd.f32 0.0, %v2112
        %2114 = vmatprep.mubr.f32.mxu0 0.0
        %2115 = vmatmul.mubr.f32.gmra.mrb[0].mxu0 %v2036
        %v2116 = vpop.f32.mrb[0].mxu0
        %v2117 = vadd.f32 0.0, %v2116
        %v2118 = vpop.f32.mrb[0].mxu0
        %v2119 = vadd.f32 0.0, %v2118
        %2120 = vmatprep.mubr.f32.mxu0 0.0
        %2121 = vmatmul.mubr.f32.gmra.mrb[0].mxu0 %v2039
        %v2122 = vpop.f32.mrb[0].mxu0
        %v2123 = vadd.f32 0.0, %v2122
        %v2124 = vpop.f32.mrb[0].mxu0
        %v2125 = vadd.f32 0.0, %v2124
        %2126 = vmatprep.mubr.f32.mxu0 0.0
        %2127 = vmatmul.mubr.f32.gmra.mrb[0].mxu0 %v2042
        %v2128 = vpop.f32.mrb[0].mxu0
        %v2129 = vadd.f32 0.0, %v2128
        %v2130 = vpop.f32.mrb[0].mxu0
        %v2131 = vadd.f32 0.0, %v2130
        %2132 = vdwg.mxu0
        %2133 = vxpose.xlu0.b32.start [1/16] %v1716, 128
        %2134 = vxpose.xlu0.b32.cont [2/16] %v1721, 128
        %2135 = vxpose.xlu0.b32.cont [3/16] %v1726, 128
        %2136 = vxpose.xlu0.b32.cont [4/16] %v1731, 128
        %2137 = vxpose.xlu0.b32.cont [5/16] 0.0, 128
        %2138 = vxpose.xlu0.b32.cont [6/16] 0.0, 128
        %2139 = vxpose.xlu0.b32.cont [7/16] 0.0, 128
        %2140 = vxpose.xlu0.b32.cont [8/16] 0.0, 128
        %2141 = vxpose.xlu0.b32.cont [9/16] 0.0, 128
        %2142 = vxpose.xlu0.b32.cont [10/16] 0.0, 128
        %2143 = vxpose.xlu0.b32.cont [11/16] 0.0, 128
        %2144 = vxpose.xlu0.b32.cont [12/16] 0.0, 128
        %2145 = vxpose.xlu0.b32.cont [13/16] 0.0, 128
        %2146 = vxpose.xlu0.b32.cont [14/16] 0.0, 128
        %2147 = vxpose.xlu0.b32.cont [15/16] 0.0, 128
        %2148 = vxpose.xlu0.b32.end [16/16] 0.0, 128
        %v2149 = vpop.trf.xlu0
        %v2150 = vpop.trf.xlu0
        %v2151 = vpop.trf.xlu0
        %v2152 = vpop.trf.xlu0
        %v2153 = vpop.trf.xlu0
        %v2154 = vpop.trf.xlu0
        %v2155 = vpop.trf.xlu0
        %v2156 = vpop.trf.xlu0
        %v2157 = vpop.trf.xlu0
        %v2158 = vpop.trf.xlu0
        %v2159 = vpop.trf.xlu0
        %v2160 = vpop.trf.xlu0
        %v2161 = vpop.trf.xlu0
        %v2162 = vpop.trf.xlu0
        %v2163 = vpop.trf.xlu0
        %v2164 = vpop.trf.xlu0
        %v2166 = vsel %vm376, %v2149, 0
        %v2169 = vsel %vm376, %v2150, 0
        %v2172 = vsel %vm376, %v2151, 0
        %v2175 = vsel %vm376, %v2152, 0
        %2177 = vmatprep.subr.mxu0 %v1147
        %2178 = vmatpush1.msra.mxu0 %v1145
        %2179 = vmatprep.subr.mxu0 %v1149
        %2180 = vmatpush1.msra.mxu0 %v1148
        %2181 = vmatprep.subr.mxu0 %v1151
        %2182 = vmatpush1.msra.mxu0 %v1150
        %2183 = vmatprep.subr.mxu0 %v1153
        %2184 = vmatpush1.msra.mxu0 %v1152
        %2185 = vmatprep.subr.mxu0 0.0
        %2186 = vmatpush1.msra.mxu0 0.0
        %2187 = vmatprep.subr.mxu0 0.0
        %2188 = vmatpush1.msra.mxu0 0.0
        %2189 = vmatprep.subr.mxu0 0.0
        %2190 = vmatpush1.msra.mxu0 0.0
        %2191 = vmatprep.subr.mxu0 0.0
        %2192 = vmatpush1.msra.mxu0 0.0
        %2193 = vmatprep.subr.mxu0 0.0
        %2194 = vmatpush1.msra.mxu0 0.0
        %2195 = vmatprep.subr.mxu0 0.0
        %2196 = vmatpush1.msra.mxu0 0.0
        %2197 = vmatprep.subr.mxu0 0.0
        %2198 = vmatpush1.msra.mxu0 0.0
        %2199 = vmatprep.subr.mxu0 0.0
        %2200 = vmatpush1.msra.mxu0 0.0
        %2201 = vmatprep.subr.mxu0 0.0
        %2202 = vmatpush1.msra.mxu0 0.0
        %2203 = vmatprep.subr.mxu0 0.0
        %2204 = vmatpush1.msra.mxu0 0.0
        %2205 = vmatprep.subr.mxu0 0.0
        %2206 = vmatpush1.msra.mxu0 0.0
        %2207 = vmatprep.subr.mxu0 0.0
        %2208 = vmatpush1.msra.mxu0 0.0
        %2209 = vmatprep.subr.mxu0 0.0
        %2210 = vmatpush1.msra.mxu0 0.0
        %2211 = vmatprep.subr.mxu0 0.0
        %2212 = vmatpush1.msra.mxu0 0.0
        %2213 = vmatprep.subr.mxu0 0.0
        %2214 = vmatpush1.msra.mxu0 0.0
        %2215 = vmatprep.subr.mxu0 0.0
        %2216 = vmatpush1.msra.mxu0 0.0
        %2217 = vmatprep.subr.mxu0 0.0
        %2218 = vmatpush1.msra.mxu0 0.0
        %2219 = vmatprep.subr.mxu0 0.0
        %2220 = vmatpush1.msra.mxu0 0.0
        %2221 = vmatprep.subr.mxu0 0.0
        %2222 = vmatpush1.msra.mxu0 0.0
        %2223 = vmatprep.subr.mxu0 0.0
        %2224 = vmatpush1.msra.mxu0 0.0
        %2225 = vmatprep.subr.mxu0 0.0
        %2226 = vmatpush1.msra.mxu0 0.0
        %2227 = vmatprep.subr.mxu0 0.0
        %2228 = vmatpush1.msra.mxu0 0.0
        %2229 = vmatprep.subr.mxu0 0.0
        %2230 = vmatpush1.msra.mxu0 0.0
        %2231 = vmatprep.subr.mxu0 0.0
        %2232 = vmatpush1.msra.mxu0 0.0
        %2233 = vmatprep.subr.mxu0 0.0
        %2234 = vmatpush1.msra.mxu0 0.0
        %2235 = vmatprep.subr.mxu0 0.0
        %2236 = vmatpush1.msra.mxu0 0.0
        %2237 = vmatprep.subr.mxu0 0.0
        %2238 = vmatpush1.msra.mxu0 0.0
        %2239 = vmatprep.subr.mxu0 0.0
        %2240 = vmatpush1.msra.mxu0 0.0
        %2241 = vmatprep.mubr.f32.mxu0 0.0
        %2242 = vmatmul.mubr.f32.gmra.mrb[0].mxu0 %v2166
        %v2243 = vpop.f32.mrb[0].mxu0
        %v2244 = vadd.f32 0.0, %v2243
        %v2245 = vpop.f32.mrb[0].mxu0
        %v2246 = vadd.f32 0.0, %v2245
        %2247 = vmatprep.mubr.f32.mxu0 0.0
        %2248 = vmatmul.mubr.f32.gmra.mrb[0].mxu0 %v2169
        %v2249 = vpop.f32.mrb[0].mxu0
        %v2250 = vadd.f32 0.0, %v2249
        %v2251 = vpop.f32.mrb[0].mxu0
        %v2252 = vadd.f32 0.0, %v2251
        %2253 = vmatprep.mubr.f32.mxu0 0.0
        %2254 = vmatmul.mubr.f32.gmra.mrb[0].mxu0 %v2172
        %v2255 = vpop.f32.mrb[0].mxu0
        %v2256 = vadd.f32 0.0, %v2255
        %v2257 = vpop.f32.mrb[0].mxu0
        %v2258 = vadd.f32 0.0, %v2257
        %2259 = vmatprep.mubr.f32.mxu0 0.0
        %2260 = vmatmul.mubr.f32.gmra.mrb[0].mxu0 %v2175
        %v2261 = vpop.f32.mrb[0].mxu0
        %v2262 = vadd.f32 0.0, %v2261
        %v2263 = vpop.f32.mrb[0].mxu0
        %v2264 = vadd.f32 0.0, %v2263
        %2265 = vdwg.mxu0
        %v2266 = vld [vmem:[%s3] sm:$0xff]
        %v2267 = vld [vmem:[%s3 + $0x8] sm:$0xff]
        %v2268 = vld [vmem:[%s3 + $0x10] sm:$0xff]
        %v2269 = vld [vmem:[%s3 + $0x18] sm:$0xff]
        %v2270 = vld [vmem:[%s4] sm:$0xff]
        %v2271 = vld [vmem:[%s4 + $0x8] sm:$0xff]
        %v2272 = vld [vmem:[%s4 + $0x10] sm:$0xff]
        %v2273 = vld [vmem:[%s4 + $0x18] sm:$0xff]
        %2275 = vset.pattern.permute.xlu0 0
        %2276 = vperm.xlu0 %2275, %v2270
        %v2277 = vpop.permute.xlu0 %2276
        %2280 = vset.pattern.permute.xlu0 0
        %2281 = vperm.xlu0 %2280, %v2271
        %v2282 = vpop.permute.xlu0 %2281
        %2285 = vset.pattern.permute.xlu0 0
        %2286 = vperm.xlu0 %2285, %v2272
        %v2287 = vpop.permute.xlu0 %2286
        %2290 = vset.pattern.permute.xlu0 0
        %2291 = vperm.xlu0 %2290, %v2273
        %v2292 = vpop.permute.xlu0 %2291
        %2294 = vmatprep.subr.mxu0 %v1847
        %2295 = vmatpush1.msra.mxu0 %v1845
        %2296 = vmatprep.subr.mxu0 %v1853
        %2297 = vmatpush1.msra.mxu0 %v1851
        %2298 = vmatprep.subr.mxu0 %v1859
        %2299 = vmatpush1.msra.mxu0 %v1857
        %2300 = vmatprep.subr.mxu0 %v1865
        %2301 = vmatpush1.msra.mxu0 %v1863
        %2302 = vmatprep.subr.mxu0 %v1980
        %2303 = vmatpush1.msra.mxu0 %v1978
        %2304 = vmatprep.subr.mxu0 %v1986
        %2305 = vmatpush1.msra.mxu0 %v1984
        %2306 = vmatprep.subr.mxu0 %v1992
        %2307 = vmatpush1.msra.mxu0 %v1990
        %2308 = vmatprep.subr.mxu0 %v1998
        %2309 = vmatpush1.msra.mxu0 %v1996
        %2310 = vmatprep.subr.mxu0 %v2113
        %2311 = vmatpush1.msra.mxu0 %v2111
        %2312 = vmatprep.subr.mxu0 %v2119
        %2313 = vmatpush1.msra.mxu0 %v2117
        %2314 = vmatprep.subr.mxu0 %v2125
        %2315 = vmatpush1.msra.mxu0 %v2123
        %2316 = vmatprep.subr.mxu0 %v2131
        %2317 = vmatpush1.msra.mxu0 %v2129
        %2318 = vmatprep.subr.mxu0 %v2246
        %2319 = vmatpush1.msra.mxu0 %v2244
        %2320 = vmatprep.subr.mxu0 %v2252
        %2321 = vmatpush1.msra.mxu0 %v2250
        %2322 = vmatprep.subr.mxu0 %v2258
        %2323 = vmatpush1.msra.mxu0 %v2256
        %2324 = vmatprep.subr.mxu0 %v2264
        %2325 = vmatpush1.msra.mxu0 %v2262
        %2326 = vmatprep.subr.mxu0 0.0
        %2327 = vmatpush1.msra.mxu0 0.0
        %2328 = vmatprep.subr.mxu0 0.0
        %2329 = vmatpush1.msra.mxu0 0.0
        %2330 = vmatprep.subr.mxu0 0.0
        %2331 = vmatpush1.msra.mxu0 0.0
        %2332 = vmatprep.subr.mxu0 0.0
        %2333 = vmatpush1.msra.mxu0 0.0
        %2334 = vmatprep.subr.mxu0 0.0
        %2335 = vmatpush1.msra.mxu0 0.0
        %2336 = vmatprep.subr.mxu0 0.0
        %2337 = vmatpush1.msra.mxu0 0.0
        %2338 = vmatprep.subr.mxu0 0.0
        %2339 = vmatpush1.msra.mxu0 0.0
        %2340 = vmatprep.subr.mxu0 0.0
        %2341 = vmatpush1.msra.mxu0 0.0
        %2342 = vmatprep.subr.mxu0 0.0
        %2343 = vmatpush1.msra.mxu0 0.0
        %2344 = vmatprep.subr.mxu0 0.0
        %2345 = vmatpush1.msra.mxu0 0.0
        %2346 = vmatprep.subr.mxu0 0.0
        %2347 = vmatpush1.msra.mxu0 0.0
        %2348 = vmatprep.subr.mxu0 0.0
        %2349 = vmatpush1.msra.mxu0 0.0
        %2350 = vmatprep.subr.mxu0 0.0
        %2351 = vmatpush1.msra.mxu0 0.0
        %2352 = vmatprep.subr.mxu0 0.0
        %2353 = vmatpush1.msra.mxu0 0.0
        %2354 = vmatprep.subr.mxu0 0.0
        %2355 = vmatpush1.msra.mxu0 0.0
        %2356 = vmatprep.subr.mxu0 0.0
        %2357 = vmatpush1.msra.mxu0 0.0
        %2358 = vmatprep.mubr.f32.mxu0 0.0
        %2359 = vmatmul.mubr.f32.gmra.mrb[0].mxu0 %v2266
        %v2360 = vpop.f32.mrb[0].mxu0
        %v2361 = vadd.f32 %v2277, %v2360
        %v2362 = vpop.f32.mrb[0].mxu0
        %v2363 = vadd.f32 %v2277, %v2362
        %2364 = vmatprep.mubr.f32.mxu0 0.0
        %2365 = vmatmul.mubr.f32.gmra.mrb[0].mxu0 %v2267
        %v2366 = vpop.f32.mrb[0].mxu0
        %v2367 = vadd.f32 %v2282, %v2366
        %v2368 = vpop.f32.mrb[0].mxu0
        %v2369 = vadd.f32 %v2282, %v2368
        %2370 = vmatprep.mubr.f32.mxu0 0.0
        %2371 = vmatmul.mubr.f32.gmra.mrb[0].mxu0 %v2268
        %v2372 = vpop.f32.mrb[0].mxu0
        %v2373 = vadd.f32 %v2287, %v2372
        %v2374 = vpop.f32.mrb[0].mxu0
        %v2375 = vadd.f32 %v2287, %v2374
        %2376 = vmatprep.mubr.f32.mxu0 0.0
        %2377 = vmatmul.mubr.f32.gmra.mrb[0].mxu0 %v2269
        %v2378 = vpop.f32.mrb[0].mxu0
        %v2379 = vadd.f32 %v2292, %v2378
        %v2380 = vpop.f32.mrb[0].mxu0
        %v2381 = vadd.f32 %v2292, %v2380
        %2382 = vdwg.mxu0
        %v2383 = vmul.f32 %v2361, %v2361
        %v2384 = vmul.f32 %v2363, %v2363
        %v2385 = vmul.f32 %v2367, %v2367
        %v2386 = vmul.f32 %v2369, %v2369
        %v2387 = vmul.f32 %v2373, %v2373
        %v2388 = vmul.f32 %v2375, %v2375
        %v2389 = vmul.f32 %v2379, %v2379
        %v2390 = vmul.f32 %v2381, %v2381
        %v2391 = vadd.f32 %v2383, %v2385
        %v2392 = vadd.f32 %v2391, %v2387
        %v2393 = vadd.f32 %v2392, %v2389
        %v2394 = vrot.slane %v2393, 4
        %v2395 = vadd.f32 %v2393, %v2394
        %v2396 = vrot.slane %v2395, 2
        %v2397 = vadd.f32 %v2395, %v2396
        %v2398 = vrot.slane %v2397, 1
        %v2399 = vadd.f32 %v2397, %v2398
        %v2400 = vadd.f32 %v2384, %v2386
        %v2401 = vadd.f32 %v2400, %v2388
        %v2402 = vadd.f32 %v2401, %v2390
        %v2403 = vrot.slane %v2402, 4
        %v2404 = vadd.f32 %v2402, %v2403
        %v2405 = vrot.slane %v2404, 2
        %v2406 = vadd.f32 %v2404, %v2405
        %v2407 = vrot.slane %v2406, 1
        %v2408 = vadd.f32 %v2406, %v2407
        %v2409 = vmax.f32 %v2399, 1e-24
        %v2410 = vmax.f32 %v2408, 1e-24
        %v2411 = vrsqrt.pop %v2409
        %v2412 = vrsqrt.pop %v2410
        %v2413 = vmul.f32 %v2361, %v2411
        %v2414 = vmul.f32 %v2363, %v2412
        %v2415 = vmul.f32 %v2367, %v2411
        %v2416 = vmul.f32 %v2369, %v2412
        %v2417 = vmul.f32 %v2373, %v2411
        %v2418 = vmul.f32 %v2375, %v2412
        %v2419 = vmul.f32 %v2379, %v2411
        %v2420 = vmul.f32 %v2381, %v2412
        %v2421 = vld [vmem:[%s5] sm:$0xff]
        %v2422 = vld [vmem:[%s5 + $0x8] sm:$0xff]
        %v2423 = vld [vmem:[%s5 + $0x10] sm:$0xff]
        %v2424 = vld [vmem:[%s5 + $0x18] sm:$0xff]
        %2426 = vset.pattern.permute.xlu0 0
        %2427 = vperm.xlu0 %2426, %v2421
        %v2428 = vpop.permute.xlu0 %2427
        %2431 = vset.pattern.permute.xlu0 0
        %2432 = vperm.xlu0 %2431, %v2422
        %v2433 = vpop.permute.xlu0 %2432
        %2436 = vset.pattern.permute.xlu0 0
        %2437 = vperm.xlu0 %2436, %v2423
        %v2438 = vpop.permute.xlu0 %2437
        %2441 = vset.pattern.permute.xlu0 0
        %2442 = vperm.xlu0 %2441, %v2424
        %v2443 = vpop.permute.xlu0 %2442
        %v2445 = vmul.f32 %v2413, %v2428
        %v2446 = vmul.f32 %v2414, %v2428
        %v2447 = vmul.f32 %v2415, %v2433
        %v2448 = vmul.f32 %v2416, %v2433
        %v2449 = vmul.f32 %v2417, %v2438
        %v2450 = vmul.f32 %v2418, %v2438
        %v2451 = vmul.f32 %v2419, %v2443
        %v2452 = vmul.f32 %v2420, %v2443
        %2453 = vst [vmem:[%s244] sm:$0xff] %v2445
        %2454 = vst [vmem:[%s244 + $0x8] sm:$0xff] %v2446
        %2455 = vst [vmem:[%s244 + $0x10] sm:$0xff] %v2447
        %2456 = vst [vmem:[%s244 + $0x18] sm:$0xff] %v2448
        %2457 = vst [vmem:[%s244 + $0x20] sm:$0xff] %v2449
        %2458 = vst [vmem:[%s244 + $0x28] sm:$0xff] %v2450
        %2459 = vst [vmem:[%s244 + $0x30] sm:$0xff] %v2451
        %2460 = vst [vmem:[%s244 + $0x38] sm:$0xff] %v2452
        %s2461 = sand.u32 %s159, 1
        %s2462 = scalar_lea.sflag [#allocation3], %s2461
        %s2463 = sand.u32 %s159, 1
        %s2464 = smul.addr %s2463, 64
        %s2465 = scalar_lea.vmem [#allocation2], %s2464
        // Predicated region
        $region45: #{tpu_custom_call.1} parent=43 // pred_check
          %p2466 = pneg %p169
        $region46: #{tpu_custom_call.1} parent=43 // pred_check_branch
          %2468 = sbr.rel (%p2466) target = $region48
        $region47: #{tpu_custom_call.1} parent=43 // pred_region
          %s2470 = ssub.s32 1024, 1024
          %2471 = vsyncadd %s2462, %s2470
          %s2472 = smul.addr %s20, 8
          %s2473 = smul.addr %s2472, 128
          %s2474 = scalar_lea.hbm %s6, %s2473
          %s2475 = sshll.u32 %s2465, 4
          %s2476 = int_to_ptr.vmem [resolvable:$true] %s2475
          %2481 = dma.vmem_to_hbm [thread:$0]  %s2476, 1024, %s2474, %s2462, 256, 256, 16
        $region48: #{tpu_custom_call.1} parent=43 // pred_fallthru
          _
      $region44: #{tpu_custom_call.1} parent=5 // pred_fallthru
        _
      %p2482 = scmp.le.s32.totalorder 2, %s15
      // Predicated region
      $region49: #{tpu_custom_call.1} parent=5 // pred_check
        %p2483 = pneg %p2482
      $region50: #{tpu_custom_call.1} parent=5 // pred_check_branch
        %2485 = sbr.rel (%p2483) target = $region52
      $region51: #{tpu_custom_call.1} parent=5 // pred_region
        %s2486 = ssub.s32 %s15, 2
        // Predicated region
        $region53: #{tpu_custom_call.1} parent=51 // pred_check
          %p2487 = pneg %p175
        $region54: #{tpu_custom_call.1} parent=51 // pred_check_branch
          %2489 = sbr.rel (%p2487) target = $region56
        $region55: #{tpu_custom_call.1} parent=51 // pred_region
          %s2490 = sand.u32 %s160, 1
          %s2491 = scalar_lea.sflag [#allocation3], %s2490
          %s2492 = sand.u32 %s160, 1
          %s2493 = smul.addr %s2492, 64
          %s2494 = scalar_lea.vmem [#allocation2], %s2493
          %2495 = dma.done %s2491, 1024
        $region56: #{tpu_custom_call.1} parent=51 // pred_fallthru
          _
      $region52: #{tpu_custom_call.1} parent=5 // pred_fallthru
        _
    $region6: #{tpu_custom_call.1} parent=1 // loop_footer
      %s19 = sadd.s32 1, %s15
    $region7: #{tpu_custom_call.1} parent=1 // loop_footer_branch
      %14 = sbr.rel target = $region3
    $region8: #{tpu_custom_call.1} parent=1 // loop_exit
      _
    %2496 = vsyncpa [#allocation3], 1
    %s2497 = scalar_lea.sflag [#allocation3], 1
    %2498 = vsyncpa %s2497, 1

</llo_original>
